<compile_context>
chip_gen: v6e
topology: v6e:2x2x1
jax: 0.10.0
libtpu: 0.0.40
codegen_flags: <defaults>
</compile_context>

<pallas_src>
import functools

import jax
import jax.numpy as jnp
from jax.experimental import pallas as pl
from jax.experimental.pallas import tpu as pltpu  # noqa: F401  (TPU backend)


# ---------------------------------------------------------------------------
# Fused Pallas kernel: encoder + num_layer GIN layers + global_add_pool
# ---------------------------------------------------------------------------
def _gnn_fused_kernel(
    x_ref, adj_ref, encw_ref, encb_ref,
    w1_ref, s1_ref, t1_ref, w2_ref, s2_ref, t2_ref,
    pool_ref, perturb_ref, out_ref,
    *, eps_list, num_layer,
):
    # ---- Node encoder: h = x @ W_enc + b_enc (+ perturb) -------------------
    h = (
        jnp.dot(x_ref[...], encw_ref[...], preferred_element_type=jnp.float32)
        + encb_ref[...]
        + perturb_ref[...]
    )                                                     # [N, D] f32

    adj = adj_ref[...]                                    # [N, N] bf16 (0/1)

    # ---- num_layer GIN conv layers; h stays resident on-chip ---------------
    for l in range(num_layer):
        msg = jnp.maximum(h, 0.0).astype(jnp.bfloat16)    # relu messages, once
        agg = jnp.dot(adj, msg, preferred_element_type=jnp.float32)   # A @ relu(h)
        pre = (1.0 + eps_list[l]) * h + agg               # f32 residual path
        # MLP: Linear(D, 2D) -> BN1 (folded scale/shift) -> ReLU
        z1 = jnp.dot(pre.astype(jnp.bfloat16), w1_ref[l],
                     preferred_element_type=jnp.float32)
        z1 = jnp.maximum(z1 * s1_ref[l] + t1_ref[l], 0.0)
        # Linear(2D, D) -> outer BN2 (folded)
        z2 = jnp.dot(z1.astype(jnp.bfloat16), w2_ref[l],
                     preferred_element_type=jnp.float32)
        h = z2 * s2_ref[l] + t2_ref[l]
        if l != num_layer - 1:                            # JK='last', no residual
            h = jnp.maximum(h, 0.0)
        # dropout = identity (eval mode)

    # ---- global_add_pool epilogue: h_graph = P @ h --------------------------
    out_ref[...] = jnp.dot(pool_ref[...], h, preferred_element_type=jnp.float32)


def gnn_forward(x, adj, pool_mat, params, perturb=None):
    """Fused forward.  x: [N, F], adj: [N, N], pool_mat: [G, N] -> [G, emb_dim]."""
    N, _ = x.shape
    D = params["enc_w"].shape[1]
    G = pool_mat.shape[0]
    num_layer = len(params["layers"])

    # Stack per-layer parameters so one pallas_call covers every layer.
    w1s = jnp.stack([lp["w1"] for lp in params["layers"]]).astype(jnp.bfloat16)
    s1s = jnp.stack([lp["s1"] for lp in params["layers"]])
    t1s = jnp.stack([lp["t1"] for lp in params["layers"]])
    w2s = jnp.stack([lp["w2"] for lp in params["layers"]]).astype(jnp.bfloat16)
    s2s = jnp.stack([lp["s2"] for lp in params["layers"]])
    t2s = jnp.stack([lp["t2"] for lp in params["layers"]])
    eps_list = tuple(float(lp["eps"]) for lp in params["layers"])

    if perturb is None:
        perturb = jnp.zeros((N, D), jnp.float32)

    kernel = functools.partial(
        _gnn_fused_kernel, eps_list=eps_list, num_layer=num_layer
    )
    # Single grid step: every operand is a whole-array VMEM block (total
    # footprint < 1 MiB at these shapes), so no BlockSpec tiling is needed.
    # TODO(synk): at large N, add a "parallel" row-tile grid axis (v7x 2 TCs)
    # and per-graph block-diagonal adjacency tiling via scalar prefetch.
    return pl.pallas_call(
        kernel,
        out_shape=jax.ShapeDtypeStruct((G, D), jnp.float32),
    )(
        x.astype(jnp.bfloat16),
        adj.astype(jnp.bfloat16),
        params["enc_w"].astype(jnp.bfloat16),
        params["enc_b"].reshape(1, D),
        w1s, s1s, t1s, w2s, s2s, t2s,
        pool_mat,                       # f32 one-hot; pooling epilogue in f32
        perturb,
    )


# ---------------------------------------------------------------------------
# Parameter construction (deterministic), BN folding, pure-JAX reference
# ---------------------------------------------------------------------------
def _fold_bn(lin_bias, gamma, beta, mean, var, eps_bn=1e-5):
    """Fold (linear bias + eval-mode BatchNorm) into per-channel scale/shift."""
    scale = gamma / jnp.sqrt(var + eps_bn)
    shift = (lin_bias - mean) * scale + beta
    return scale.reshape(1, -1), shift.reshape(1, -1)


def init_params(key, feat_dim, emb_dim, num_layer):
    hidden = 2 * emb_dim
    keys = jax.random.split(key, 1 + 2 * num_layer)
    params = {
        "enc_w": 0.1 * jax.random.normal(keys[0], (feat_dim, emb_dim), jnp.float32),
        "enc_b": jnp.zeros((emb_dim,), jnp.float32),
        "layers": [],
    }
    for l in range(num_layer):
        w1 = 0.05 * jax.random.normal(keys[1 + 2 * l], (emb_dim, hidden), jnp.float32)
        b1 = jnp.zeros((hidden,), jnp.float32)
        w2 = 0.05 * jax.random.normal(keys[2 + 2 * l], (hidden, emb_dim), jnp.float32)
        b2 = jnp.zeros((emb_dim,), jnp.float32)
        # BatchNorm (eval mode): gamma=1, beta=0, running_mean=0, running_var=1
        s1, t1 = _fold_bn(b1, jnp.ones((hidden,)), jnp.zeros((hidden,)),
                          jnp.zeros((hidden,)), jnp.ones((hidden,)))
        s2, t2 = _fold_bn(b2, jnp.ones((emb_dim,)), jnp.zeros((emb_dim,)),
                          jnp.zeros((emb_dim,)), jnp.ones((emb_dim,)))
        params["layers"].append(
            {"w1": w1, "s1": s1, "t1": t1, "w2": w2, "s2": s2, "t2": t2,
             "eps": 0.0}  # GIN eps parameter, initialized to 0
        )
    return params


def gnn_reference(x, adj, pool_mat, params, perturb=None):
    """Pure-JAX reference with the same bf16 operand casts / f32 accumulation."""
    xb = x.astype(jnp.bfloat16)
    adjb = adj.astype(jnp.bfloat16)
    h = jnp.dot(xb, params["enc_w"].astype(jnp.bfloat16),
                preferred_element_type=jnp.float32) + params["enc_b"][None, :]
    if perturb is not None:
        h = h + perturb
    num_layer = len(params["layers"])
    for l, lp in enumerate(params["layers"]):
        msg = jnp.maximum(h, 0.0).astype(jnp.bfloat16)
        agg = jnp.dot(adjb, msg, preferred_element_type=jnp.float32)
        pre = (1.0 + float(lp["eps"])) * h + agg
        z1 = jnp.dot(pre.astype(jnp.bfloat16), lp["w1"].astype(jnp.bfloat16),
                     preferred_element_type=jnp.float32)
        z1 = jnp.maximum(z1 * lp["s1"] + lp["t1"], 0.0)
        z2 = jnp.dot(z1.astype(jnp.bfloat16), lp["w2"].astype(jnp.bfloat16),
                     preferred_element_type=jnp.float32)
        h = z2 * lp["s2"] + lp["t2"]
        if l != num_layer - 1:
            h = jnp.maximum(h, 0.0)
    return jnp.dot(pool_mat, h, preferred_element_type=jnp.float32)


# ---------------------------------------------------------------------------
if __name__ == "__main__":
    NUM_LAYER = 3
    EMB_DIM = 128
    FEAT_DIM = 16
    NUM_GRAPHS = 4
    NODES_PER_GRAPH = 16
    N = NUM_GRAPHS * NODES_PER_GRAPH  # 64 nodes total

    key = jax.random.PRNGKey(0)
    k_x, k_adj, k_params = jax.random.split(key, 3)

    # Node features
    x = jax.random.normal(k_x, (N, FEAT_DIM), jnp.float32)

    # Block-diagonal (per-graph) random adjacency, symmetric, no self-loops
    block_mask = jnp.kron(jnp.eye(NUM_GRAPHS, dtype=jnp.float32),
                          jnp.ones((NODES_PER_GRAPH, NODES_PER_GRAPH), jnp.float32))
    rand = (jax.random.uniform(k_adj, (N, N)) < 0.3).astype(jnp.float32)
    adj = rand * block_mask
    adj = jnp.maximum(adj, adj.T) * (1.0 - jnp.eye(N, dtype=jnp.float32))

    # batch assignment and one-hot pooling matrix
    batch = jnp.repeat(jnp.arange(NUM_GRAPHS, dtype=jnp.int32), NODES_PER_GRAPH)
    pool_mat = (batch[None, :] == jnp.arange(NUM_GRAPHS, dtype=jnp.int32)[:, None]
                ).astype(jnp.float32)

    params = init_params(k_params, FEAT_DIM, EMB_DIM, NUM_LAYER)

    h_graph = gnn_forward(x, adj, pool_mat, params, perturb=None)
    h_graph = jax.block_until_ready(h_graph)

    assert h_graph.shape == (NUM_GRAPHS, EMB_DIM)
    assert h_graph.dtype == jnp.float32
    assert bool(jnp.all(jnp.isfinite(h_graph)))

    # Correctness check against a pure-JAX reference (same bf16/f32 recipe).
    h_ref = jax.block_until_ready(gnn_reference(x, adj, pool_mat, params))
    max_abs = float(jnp.max(jnp.abs(h_graph - h_ref)))
    denom = float(jnp.max(jnp.abs(h_ref))) + 1e-6
    assert max_abs / denom < 5e-2, f"mismatch: max_abs={max_abs}, ref_max={denom}"

    print("KERNEL_OK")
</pallas_src>

<mosaic_0001>
module attributes {stable_mosaic.version = 11 : i64} {
  func.func @_gnn_fused_kernel(%arg0: memref<64x16xbf16, #tpu.memory_space<vmem>>, %arg1: memref<64x64xbf16, #tpu.memory_space<vmem>>, %arg2: memref<16x128xbf16, #tpu.memory_space<vmem>>, %arg3: memref<1x128xf32, #tpu.memory_space<vmem>>, %arg4: memref<3x128x256xbf16, #tpu.memory_space<vmem>>, %arg5: memref<3x1x256xf32, #tpu.memory_space<vmem>>, %arg6: memref<3x1x256xf32, #tpu.memory_space<vmem>>, %arg7: memref<3x256x128xbf16, #tpu.memory_space<vmem>>, %arg8: memref<3x1x128xf32, #tpu.memory_space<vmem>>, %arg9: memref<3x1x128xf32, #tpu.memory_space<vmem>>, %arg10: memref<4x64xf32, #tpu.memory_space<vmem>>, %arg11: memref<64x128xf32, #tpu.memory_space<vmem>>, %arg12: memref<4x128xf32, #tpu.memory_space<vmem>>) attributes {dimension_semantics = [], scalar_prefetch = 0 : i64, scratch_operands = 0 : i64, tpu.core_type = #tpu.core_type<tc>} {
    %c0 = arith.constant 0 : index
    %c0_0 = arith.constant 0 : index
    %0 = vector.load %arg0[%c0, %c0_0] : memref<64x16xbf16, #tpu.memory_space<vmem>>, vector<64x16xbf16>
    %c0_1 = arith.constant 0 : index
    %c0_2 = arith.constant 0 : index
    %1 = vector.load %arg2[%c0_1, %c0_2] : memref<16x128xbf16, #tpu.memory_space<vmem>>, vector<16x128xbf16>
    %cst = arith.constant dense<0.000000e+00> : vector<64x128xf32>
    %2 = tpu.matmul %0, %1, %cst {dimension_numbers = #tpu.dot_dimension_numbers<[1], [0], [0], [1], [0, 0, 1, 1], [], []>} : vector<64x16xbf16>, vector<16x128xbf16>, vector<64x128xf32> -> vector<64x128xf32>
    %c0_3 = arith.constant 0 : index
    %c0_4 = arith.constant 0 : index
    %3 = vector.load %arg3[%c0_3, %c0_4] : memref<1x128xf32, #tpu.memory_space<vmem>>, vector<1x128xf32>
    %4 = vector.broadcast %3 : vector<1x128xf32> to vector<64x128xf32>
    %5 = arith.addf %2, %4 : vector<64x128xf32>
    %c0_5 = arith.constant 0 : index
    %c0_6 = arith.constant 0 : index
    %6 = vector.load %arg11[%c0_5, %c0_6] : memref<64x128xf32, #tpu.memory_space<vmem>>, vector<64x128xf32>
    %7 = arith.addf %5, %6 : vector<64x128xf32>
    %c0_7 = arith.constant 0 : index
    %c0_8 = arith.constant 0 : index
    %8 = vector.load %arg1[%c0_7, %c0_8] : memref<64x64xbf16, #tpu.memory_space<vmem>>, vector<64x64xbf16>
    %cst_9 = arith.constant 0.000000e+00 : f32
    %9 = vector.broadcast %cst_9 : f32 to vector<64x128xf32>
    %10 = arith.maximumf %7, %9 : vector<64x128xf32>
    %11 = arith.truncf %10 : vector<64x128xf32> to vector<64x128xbf16>
    %cst_10 = arith.constant dense<0.000000e+00> : vector<64x128xf32>
    %12 = tpu.matmul %8, %11, %cst_10 {dimension_numbers = #tpu.dot_dimension_numbers<[1], [0], [0], [1], [0, 0, 1, 1], [], []>} : vector<64x64xbf16>, vector<64x128xbf16>, vector<64x128xf32> -> vector<64x128xf32>
    %cst_11 = arith.constant 1.000000e+00 : f32
    %13 = vector.broadcast %cst_11 : f32 to vector<64x128xf32>
    %14 = arith.mulf %13, %7 : vector<64x128xf32>
    %15 = arith.addf %14, %12 : vector<64x128xf32>
    %16 = arith.truncf %15 : vector<64x128xf32> to vector<64x128xbf16>
    %c0_12 = arith.constant 0 : index
    %c0_13 = arith.constant 0 : index
    %c0_14 = arith.constant 0 : index
    %17 = vector.load %arg4[%c0_12, %c0_13, %c0_14] : memref<3x128x256xbf16, #tpu.memory_space<vmem>>, vector<1x128x256xbf16>
    %18 = vector.shape_cast %17 : vector<1x128x256xbf16> to vector<128x256xbf16>
    %cst_15 = arith.constant dense<0.000000e+00> : vector<64x256xf32>
    %19 = tpu.matmul %16, %18, %cst_15 {dimension_numbers = #tpu.dot_dimension_numbers<[1], [0], [0], [1], [0, 0, 1, 1], [], []>} : vector<64x128xbf16>, vector<128x256xbf16>, vector<64x256xf32> -> vector<64x256xf32>
    %c0_16 = arith.constant 0 : index
    %c0_17 = arith.constant 0 : index
    %c0_18 = arith.constant 0 : index
    %20 = vector.load %arg5[%c0_16, %c0_17, %c0_18] : memref<3x1x256xf32, #tpu.memory_space<vmem>>, vector<1x1x256xf32>
    %21 = vector.shape_cast %20 : vector<1x1x256xf32> to vector<1x256xf32>
    %22 = vector.broadcast %21 : vector<1x256xf32> to vector<64x256xf32>
    %23 = arith.mulf %19, %22 : vector<64x256xf32>
    %c0_19 = arith.constant 0 : index
    %c0_20 = arith.constant 0 : index
    %c0_21 = arith.constant 0 : index
    %24 = vector.load %arg6[%c0_19, %c0_20, %c0_21] : memref<3x1x256xf32, #tpu.memory_space<vmem>>, vector<1x1x256xf32>
    %25 = vector.shape_cast %24 : vector<1x1x256xf32> to vector<1x256xf32>
    %26 = vector.broadcast %25 : vector<1x256xf32> to vector<64x256xf32>
    %27 = arith.addf %23, %26 : vector<64x256xf32>
    %cst_22 = arith.constant 0.000000e+00 : f32
    %28 = vector.broadcast %cst_22 : f32 to vector<64x256xf32>
    %29 = arith.maximumf %27, %28 : vector<64x256xf32>
    %30 = arith.truncf %29 : vector<64x256xf32> to vector<64x256xbf16>
    %c0_23 = arith.constant 0 : index
    %c0_24 = arith.constant 0 : index
    %c0_25 = arith.constant 0 : index
    %31 = vector.load %arg7[%c0_23, %c0_24, %c0_25] : memref<3x256x128xbf16, #tpu.memory_space<vmem>>, vector<1x256x128xbf16>
    %32 = vector.shape_cast %31 : vector<1x256x128xbf16> to vector<256x128xbf16>
    %cst_26 = arith.constant dense<0.000000e+00> : vector<64x128xf32>
    %33 = tpu.matmul %30, %32, %cst_26 {dimension_numbers = #tpu.dot_dimension_numbers<[1], [0], [0], [1], [0, 0, 1, 1], [], []>} : vector<64x256xbf16>, vector<256x128xbf16>, vector<64x128xf32> -> vector<64x128xf32>
    %c0_27 = arith.constant 0 : index
    %c0_28 = arith.constant 0 : index
    %c0_29 = arith.constant 0 : index
    %34 = vector.load %arg8[%c0_27, %c0_28, %c0_29] : memref<3x1x128xf32, #tpu.memory_space<vmem>>, vector<1x1x128xf32>
    %35 = vector.shape_cast %34 : vector<1x1x128xf32> to vector<1x128xf32>
    %36 = vector.broadcast %35 : vector<1x128xf32> to vector<64x128xf32>
    %37 = arith.mulf %33, %36 : vector<64x128xf32>
    %c0_30 = arith.constant 0 : index
    %c0_31 = arith.constant 0 : index
    %c0_32 = arith.constant 0 : index
    %38 = vector.load %arg9[%c0_30, %c0_31, %c0_32] : memref<3x1x128xf32, #tpu.memory_space<vmem>>, vector<1x1x128xf32>
    %39 = vector.shape_cast %38 : vector<1x1x128xf32> to vector<1x128xf32>
    %40 = vector.broadcast %39 : vector<1x128xf32> to vector<64x128xf32>
    %41 = arith.addf %37, %40 : vector<64x128xf32>
    %cst_33 = arith.constant 0.000000e+00 : f32
    %42 = vector.broadcast %cst_33 : f32 to vector<64x128xf32>
    %43 = arith.maximumf %41, %42 : vector<64x128xf32>
    %cst_34 = arith.constant 0.000000e+00 : f32
    %44 = vector.broadcast %cst_34 : f32 to vector<64x128xf32>
    %45 = arith.maximumf %43, %44 : vector<64x128xf32>
    %46 = arith.truncf %45 : vector<64x128xf32> to vector<64x128xbf16>
    %cst_35 = arith.constant dense<0.000000e+00> : vector<64x128xf32>
    %47 = tpu.matmul %8, %46, %cst_35 {dimension_numbers = #tpu.dot_dimension_numbers<[1], [0], [0], [1], [0, 0, 1, 1], [], []>} : vector<64x64xbf16>, vector<64x128xbf16>, vector<64x128xf32> -> vector<64x128xf32>
    %cst_36 = arith.constant 1.000000e+00 : f32
    %48 = vector.broadcast %cst_36 : f32 to vector<64x128xf32>
    %49 = arith.mulf %48, %43 : vector<64x128xf32>
    %50 = arith.addf %49, %47 : vector<64x128xf32>
    %51 = arith.truncf %50 : vector<64x128xf32> to vector<64x128xbf16>
    %c1 = arith.constant 1 : index
    %c0_37 = arith.constant 0 : index
    %c0_38 = arith.constant 0 : index
    %52 = vector.load %arg4[%c1, %c0_37, %c0_38] : memref<3x128x256xbf16, #tpu.memory_space<vmem>>, vector<1x128x256xbf16>
    %53 = vector.shape_cast %52 : vector<1x128x256xbf16> to vector<128x256xbf16>
    %cst_39 = arith.constant dense<0.000000e+00> : vector<64x256xf32>
    %54 = tpu.matmul %51, %53, %cst_39 {dimension_numbers = #tpu.dot_dimension_numbers<[1], [0], [0], [1], [0, 0, 1, 1], [], []>} : vector<64x128xbf16>, vector<128x256xbf16>, vector<64x256xf32> -> vector<64x256xf32>
    %c1_40 = arith.constant 1 : index
    %c0_41 = arith.constant 0 : index
    %c0_42 = arith.constant 0 : index
    %55 = vector.load %arg5[%c1_40, %c0_41, %c0_42] : memref<3x1x256xf32, #tpu.memory_space<vmem>>, vector<1x1x256xf32>
    %56 = vector.shape_cast %55 : vector<1x1x256xf32> to vector<1x256xf32>
    %57 = vector.broadcast %56 : vector<1x256xf32> to vector<64x256xf32>
    %58 = arith.mulf %54, %57 : vector<64x256xf32>
    %c1_43 = arith.constant 1 : index
    %c0_44 = arith.constant 0 : index
    %c0_45 = arith.constant 0 : index
    %59 = vector.load %arg6[%c1_43, %c0_44, %c0_45] : memref<3x1x256xf32, #tpu.memory_space<vmem>>, vector<1x1x256xf32>
    %60 = vector.shape_cast %59 : vector<1x1x256xf32> to vector<1x256xf32>
    %61 = vector.broadcast %60 : vector<1x256xf32> to vector<64x256xf32>
    %62 = arith.addf %58, %61 : vector<64x256xf32>
    %cst_46 = arith.constant 0.000000e+00 : f32
    %63 = vector.broadcast %cst_46 : f32 to vector<64x256xf32>
    %64 = arith.maximumf %62, %63 : vector<64x256xf32>
    %65 = arith.truncf %64 : vector<64x256xf32> to vector<64x256xbf16>
    %c1_47 = arith.constant 1 : index
    %c0_48 = arith.constant 0 : index
    %c0_49 = arith.constant 0 : index
    %66 = vector.load %arg7[%c1_47, %c0_48, %c0_49] : memref<3x256x128xbf16, #tpu.memory_space<vmem>>, vector<1x256x128xbf16>
    %67 = vector.shape_cast %66 : vector<1x256x128xbf16> to vector<256x128xbf16>
    %cst_50 = arith.constant dense<0.000000e+00> : vector<64x128xf32>
    %68 = tpu.matmul %65, %67, %cst_50 {dimension_numbers = #tpu.dot_dimension_numbers<[1], [0], [0], [1], [0, 0, 1, 1], [], []>} : vector<64x256xbf16>, vector<256x128xbf16>, vector<64x128xf32> -> vector<64x128xf32>
    %c1_51 = arith.constant 1 : index
    %c0_52 = arith.constant 0 : index
    %c0_53 = arith.constant 0 : index
    %69 = vector.load %arg8[%c1_51, %c0_52, %c0_53] : memref<3x1x128xf32, #tpu.memory_space<vmem>>, vector<1x1x128xf32>
    %70 = vector.shape_cast %69 : vector<1x1x128xf32> to vector<1x128xf32>
    %71 = vector.broadcast %70 : vector<1x128xf32> to vector<64x128xf32>
    %72 = arith.mulf %68, %71 : vector<64x128xf32>
    %c1_54 = arith.constant 1 : index
    %c0_55 = arith.constant 0 : index
    %c0_56 = arith.constant 0 : index
    %73 = vector.load %arg9[%c1_54, %c0_55, %c0_56] : memref<3x1x128xf32, #tpu.memory_space<vmem>>, vector<1x1x128xf32>
    %74 = vector.shape_cast %73 : vector<1x1x128xf32> to vector<1x128xf32>
    %75 = vector.broadcast %74 : vector<1x128xf32> to vector<64x128xf32>
    %76 = arith.addf %72, %75 : vector<64x128xf32>
    %cst_57 = arith.constant 0.000000e+00 : f32
    %77 = vector.broadcast %cst_57 : f32 to vector<64x128xf32>
    %78 = arith.maximumf %76, %77 : vector<64x128xf32>
    %cst_58 = arith.constant 0.000000e+00 : f32
    %79 = vector.broadcast %cst_58 : f32 to vector<64x128xf32>
    %80 = arith.maximumf %78, %79 : vector<64x128xf32>
    %81 = arith.truncf %80 : vector<64x128xf32> to vector<64x128xbf16>
    %cst_59 = arith.constant dense<0.000000e+00> : vector<64x128xf32>
    %82 = tpu.matmul %8, %81, %cst_59 {dimension_numbers = #tpu.dot_dimension_numbers<[1], [0], [0], [1], [0, 0, 1, 1], [], []>} : vector<64x64xbf16>, vector<64x128xbf16>, vector<64x128xf32> -> vector<64x128xf32>
    %cst_60 = arith.constant 1.000000e+00 : f32
    %83 = vector.broadcast %cst_60 : f32 to vector<64x128xf32>
    %84 = arith.mulf %83, %78 : vector<64x128xf32>
    %85 = arith.addf %84, %82 : vector<64x128xf32>
    %86 = arith.truncf %85 : vector<64x128xf32> to vector<64x128xbf16>
    %c2 = arith.constant 2 : index
    %c0_61 = arith.constant 0 : index
    %c0_62 = arith.constant 0 : index
    %87 = vector.load %arg4[%c2, %c0_61, %c0_62] : memref<3x128x256xbf16, #tpu.memory_space<vmem>>, vector<1x128x256xbf16>
    %88 = vector.shape_cast %87 : vector<1x128x256xbf16> to vector<128x256xbf16>
    %cst_63 = arith.constant dense<0.000000e+00> : vector<64x256xf32>
    %89 = tpu.matmul %86, %88, %cst_63 {dimension_numbers = #tpu.dot_dimension_numbers<[1], [0], [0], [1], [0, 0, 1, 1], [], []>} : vector<64x128xbf16>, vector<128x256xbf16>, vector<64x256xf32> -> vector<64x256xf32>
    %c2_64 = arith.constant 2 : index
    %c0_65 = arith.constant 0 : index
    %c0_66 = arith.constant 0 : index
    %90 = vector.load %arg5[%c2_64, %c0_65, %c0_66] : memref<3x1x256xf32, #tpu.memory_space<vmem>>, vector<1x1x256xf32>
    %91 = vector.shape_cast %90 : vector<1x1x256xf32> to vector<1x256xf32>
    %92 = vector.broadcast %91 : vector<1x256xf32> to vector<64x256xf32>
    %93 = arith.mulf %89, %92 : vector<64x256xf32>
    %c2_67 = arith.constant 2 : index
    %c0_68 = arith.constant 0 : index
    %c0_69 = arith.constant 0 : index
    %94 = vector.load %arg6[%c2_67, %c0_68, %c0_69] : memref<3x1x256xf32, #tpu.memory_space<vmem>>, vector<1x1x256xf32>
    %95 = vector.shape_cast %94 : vector<1x1x256xf32> to vector<1x256xf32>
    %96 = vector.broadcast %95 : vector<1x256xf32> to vector<64x256xf32>
    %97 = arith.addf %93, %96 : vector<64x256xf32>
    %cst_70 = arith.constant 0.000000e+00 : f32
    %98 = vector.broadcast %cst_70 : f32 to vector<64x256xf32>
    %99 = arith.maximumf %97, %98 : vector<64x256xf32>
    %100 = arith.truncf %99 : vector<64x256xf32> to vector<64x256xbf16>
    %c2_71 = arith.constant 2 : index
    %c0_72 = arith.constant 0 : index
    %c0_73 = arith.constant 0 : index
    %101 = vector.load %arg7[%c2_71, %c0_72, %c0_73] : memref<3x256x128xbf16, #tpu.memory_space<vmem>>, vector<1x256x128xbf16>
    %102 = vector.shape_cast %101 : vector<1x256x128xbf16> to vector<256x128xbf16>
    %cst_74 = arith.constant dense<0.000000e+00> : vector<64x128xf32>
    %103 = tpu.matmul %100, %102, %cst_74 {dimension_numbers = #tpu.dot_dimension_numbers<[1], [0], [0], [1], [0, 0, 1, 1], [], []>} : vector<64x256xbf16>, vector<256x128xbf16>, vector<64x128xf32> -> vector<64x128xf32>
    %c2_75 = arith.constant 2 : index
    %c0_76 = arith.constant 0 : index
    %c0_77 = arith.constant 0 : index
    %104 = vector.load %arg8[%c2_75, %c0_76, %c0_77] : memref<3x1x128xf32, #tpu.memory_space<vmem>>, vector<1x1x128xf32>
    %105 = vector.shape_cast %104 : vector<1x1x128xf32> to vector<1x128xf32>
    %106 = vector.broadcast %105 : vector<1x128xf32> to vector<64x128xf32>
    %107 = arith.mulf %103, %106 : vector<64x128xf32>
    %c2_78 = arith.constant 2 : index
    %c0_79 = arith.constant 0 : index
    %c0_80 = arith.constant 0 : index
    %108 = vector.load %arg9[%c2_78, %c0_79, %c0_80] : memref<3x1x128xf32, #tpu.memory_space<vmem>>, vector<1x1x128xf32>
    %109 = vector.shape_cast %108 : vector<1x1x128xf32> to vector<1x128xf32>
    %110 = vector.broadcast %109 : vector<1x128xf32> to vector<64x128xf32>
    %111 = arith.addf %107, %110 : vector<64x128xf32>
    %c0_81 = arith.constant 0 : index
    %c0_82 = arith.constant 0 : index
    %112 = vector.load %arg10[%c0_81, %c0_82] : memref<4x64xf32, #tpu.memory_space<vmem>>, vector<4x64xf32>
    %cst_83 = arith.constant dense<0.000000e+00> : vector<4x128xf32>
    %113 = tpu.matmul %112, %111, %cst_83 {dimension_numbers = #tpu.dot_dimension_numbers<[1], [0], [0], [1], [0, 0, 1, 1], [], []>} : vector<4x64xf32>, vector<64x128xf32>, vector<4x128xf32> -> vector<4x128xf32>
    %c0_84 = arith.constant 0 : index
    %c0_85 = arith.constant 0 : index
    %114 = vector.load %arg12[%c0_84, %c0_85] : memref<4x128xf32, #tpu.memory_space<vmem>>, vector<4x128xf32>
    tpu.vector_store %arg12[%c0_84, %c0_85], %113 {strides = array<i32>} : memref<4x128xf32, #tpu.memory_space<vmem>>, vector<4x128xf32>,
    return
  }
}

</mosaic_0001>

<llo_original>
// kernel: tpu_custom_call.1
$region0: #{tpu_custom_call.1}
  #allocation0 [shape = 'u32[]', space=smem, size = 0x4, offset = 0x4, fixed_abs, tag = 'smem constant byte address 0x4 - core index']
  #allocation1 [shape = 'u32[144,128]{1,0:T(1,128)}', space=vmem, size = 0x12000, scoped, tag = 'internal scratch']
  %s0 = inlined_call_operand.vmem [shape: bf16[64,16], index: 0, kind: input, shape index: {}]
  %s1 = inlined_call_operand.vmem [shape: bf16[64,64], index: 1, kind: input, shape index: {}]
  %s2 = inlined_call_operand.vmem [shape: bf16[16,128], index: 2, kind: input, shape index: {}]
  %s3 = inlined_call_operand.hbm [shape: f32[1,128], index: 3, kind: input, shape index: {}]
  %s4 = inlined_call_operand.hbm [shape: bf16[3,128,256], index: 4, kind: input, shape index: {}]
  %s5 = inlined_call_operand.vmem [shape: f32[3,1,256], index: 5, kind: input, shape index: {}]
  %s6 = inlined_call_operand.hbm [shape: f32[3,1,256], index: 6, kind: input, shape index: {}]
  %s7 = inlined_call_operand.hbm [shape: bf16[3,256,128], index: 7, kind: input, shape index: {}]
  %s8 = inlined_call_operand.vmem [shape: f32[3,1,128], index: 8, kind: input, shape index: {}]
  %s9 = inlined_call_operand.vmem [shape: f32[3,1,128], index: 9, kind: input, shape index: {}]
  %s10 = inlined_call_operand.vmem [shape: f32[4,64], index: 10, kind: input, shape index: {}]
  %s11 = inlined_call_operand.hbm [shape: f32[64,128], index: 11, kind: input, shape index: {}]
  %s12 = inlined_call_operand.hbm [shape: f32[4,128], index: 12, kind: output, shape index: {}]
  %s13 = sld [smem:[#allocation0]]
  $region78: #{tpu_custom_call.1} parent=0
    _
  %s15 = ssub.s32 1, %s13
  %s16 = scalar_select 0, %s15, %s13
  $region1: #{tpu_custom_call.1} parent=0
    #allocation2 [shape = 'u8[512]{0}', space=vmem, size = 0x400, scoped, tag = 'input window, operand 3, single buffered']
    #allocation3 [shape = 's32[1]{0}', space=sflag, size = 0x4, scoped, tag = 'scoped memory for tpu_custom_call.1']
    #allocation4 [shape = 's32[1]{0}', space=sflag, size = 0x4, scoped, tag = 'scoped memory for tpu_custom_call.1']
    #allocation5 [shape = 'u8[196608]{0}', space=vmem, size = 0x30000, scoped, tag = 'input window, operand 4, single buffered']
    #allocation6 [shape = 's32[1]{0}', space=sflag, size = 0x4, scoped, tag = 'scoped memory for tpu_custom_call.1']
    #allocation7 [shape = 'u8[3072]{0}', space=vmem, size = 0xc00, scoped, tag = 'input window, operand 6, single buffered']
    #allocation8 [shape = 'u8[196608]{0}', space=vmem, size = 0x30000, scoped, tag = 'input window, operand 7, single buffered']
    #allocation9 [shape = 's32[1]{0}', space=sflag, size = 0x4, scoped, tag = 'scoped memory for tpu_custom_call.1']
    #allocation10 [shape = 'u8[32768]{0}', space=vmem, size = 0x8000, scoped, tag = 'input window, operand 11, single buffered']
    #allocation11 [shape = 'u8[2048]{0}', space=vmem, size = 0x800, scoped, tag = 'output window, operand 0, single buffered']
    %17 = vsyncpa [#allocation3], 0
    %18 = vsyncpa [#allocation6], 0
    %19 = vsyncpa [#allocation9], 0
    %20 = vsyncpa [#allocation4], 0
    // Predicated region
    $region2: #{tpu_custom_call.1} parent=1 // pred_check
      _
    $region3: #{tpu_custom_call.1} parent=1 // pred_check_branch
      %22 = sbr.rel (0) target = $region5
    $region4: #{tpu_custom_call.1} parent=1 // pred_region
      _
    $region5: #{tpu_custom_call.1} parent=1 // pred_fallthru
      _
    // Predicated region
    $region6: #{tpu_custom_call.1} parent=1 // pred_check
      _
    $region7: #{tpu_custom_call.1} parent=1 // pred_check_branch
      %24 = sbr.rel (0) target = $region9
    $region8: #{tpu_custom_call.1} parent=1 // pred_region
      _
    $region9: #{tpu_custom_call.1} parent=1 // pred_fallthru
      _
    // Predicated region
    $region10: #{tpu_custom_call.1} parent=1 // pred_check
      _
    $region11: #{tpu_custom_call.1} parent=1 // pred_check_branch
      %26 = sbr.rel (0) target = $region13
    $region12: #{tpu_custom_call.1} parent=1 // pred_region
      _
    $region13: #{tpu_custom_call.1} parent=1 // pred_fallthru
      _
    // Predicated region
    $region14: #{tpu_custom_call.1} parent=1 // pred_check
      _
    $region15: #{tpu_custom_call.1} parent=1 // pred_check_branch
      %28 = sbr.rel (0) target = $region17
    $region16: #{tpu_custom_call.1} parent=1 // pred_region
      %s30 = ssub.s32 16, 16
      %31 = vsyncadd [#allocation3], %s30
      %s33 = sshll.u32 [#allocation2], 4
      %s34 = int_to_ptr.vmem [resolvable:$true] %s33
      %36 = dma.hbm_to_vmem [thread:$0]  %s3, 16, %s34, [#allocation3]
    $region17: #{tpu_custom_call.1} parent=1 // pred_fallthru
      _
    // Predicated region
    $region18: #{tpu_custom_call.1} parent=1 // pred_check
      _
    $region19: #{tpu_custom_call.1} parent=1 // pred_check_branch
      %38 = sbr.rel (0) target = $region21
    $region20: #{tpu_custom_call.1} parent=1 // pred_region
      %s40 = ssub.s32 6144, 6144
      %41 = vsyncadd [#allocation6], %s40
      %s42 = sshll.u32 [#allocation5], 4
      %s43 = int_to_ptr.vmem [resolvable:$true] %s42
      %48 = dma.hbm_to_vmem [thread:$0]  %s4, 6144, %s43, [#allocation6], 128, 128, 8
    $region21: #{tpu_custom_call.1} parent=1 // pred_fallthru
      _
    // Predicated region
    $region22: #{tpu_custom_call.1} parent=1 // pred_check
      _
    $region23: #{tpu_custom_call.1} parent=1 // pred_check_branch
      %50 = sbr.rel (0) target = $region25
    $region24: #{tpu_custom_call.1} parent=1 // pred_region
      _
    $region25: #{tpu_custom_call.1} parent=1 // pred_fallthru
      _
    // Predicated region
    $region26: #{tpu_custom_call.1} parent=1 // pred_check
      _
    $region27: #{tpu_custom_call.1} parent=1 // pred_check_branch
      %52 = sbr.rel (0) target = $region29
    $region28: #{tpu_custom_call.1} parent=1 // pred_region
      %s54 = ssub.s32 96, 96
      %55 = vsyncadd [#allocation6], %s54
      %s56 = sshll.u32 [#allocation7], 4
      %s57 = int_to_ptr.vmem [resolvable:$true] %s56
      %62 = dma.hbm_to_vmem [thread:$0]  %s6, 96, %s57, [#allocation6], 32, 32, 2
    $region29: #{tpu_custom_call.1} parent=1 // pred_fallthru
      _
    // Predicated region
    $region30: #{tpu_custom_call.1} parent=1 // pred_check
      _
    $region31: #{tpu_custom_call.1} parent=1 // pred_check_branch
      %64 = sbr.rel (0) target = $region33
    $region32: #{tpu_custom_call.1} parent=1 // pred_region
      %s66 = ssub.s32 6144, 6144
      %67 = vsyncadd [#allocation9], %s66
      %s68 = sshll.u32 [#allocation8], 4
      %s69 = int_to_ptr.vmem [resolvable:$true] %s68
      %74 = dma.hbm_to_vmem [thread:$0]  %s7, 6144, %s69, [#allocation9], 64, 64, 4
    $region33: #{tpu_custom_call.1} parent=1 // pred_fallthru
      _
    // Predicated region
    $region34: #{tpu_custom_call.1} parent=1 // pred_check
      _
    $region35: #{tpu_custom_call.1} parent=1 // pred_check_branch
      %76 = sbr.rel (0) target = $region37
    $region36: #{tpu_custom_call.1} parent=1 // pred_region
      _
    $region37: #{tpu_custom_call.1} parent=1 // pred_fallthru
      _
    // Predicated region
    $region38: #{tpu_custom_call.1} parent=1 // pred_check
      _
    $region39: #{tpu_custom_call.1} parent=1 // pred_check_branch
      %78 = sbr.rel (0) target = $region41
    $region40: #{tpu_custom_call.1} parent=1 // pred_region
      _
    $region41: #{tpu_custom_call.1} parent=1 // pred_fallthru
      _
    // Predicated region
    $region42: #{tpu_custom_call.1} parent=1 // pred_check
      _
    $region43: #{tpu_custom_call.1} parent=1 // pred_check_branch
      %80 = sbr.rel (0) target = $region45
    $region44: #{tpu_custom_call.1} parent=1 // pred_region
      _
    $region45: #{tpu_custom_call.1} parent=1 // pred_fallthru
      _
    // Predicated region
    $region46: #{tpu_custom_call.1} parent=1 // pred_check
      _
    $region47: #{tpu_custom_call.1} parent=1 // pred_check_branch
      %82 = sbr.rel (0) target = $region49
    $region48: #{tpu_custom_call.1} parent=1 // pred_region
      %s84 = ssub.s32 1024, 1024
      %85 = vsyncadd [#allocation9], %s84
      %s86 = sshll.u32 [#allocation10], 4
      %s87 = int_to_ptr.vmem [resolvable:$true] %s86
      %92 = dma.hbm_to_vmem [thread:$0]  %s11, 1024, %s87, [#allocation9], 128, 128, 8
    $region49: #{tpu_custom_call.1} parent=1 // pred_fallthru
      _
    // Predicated region
    $region50: #{tpu_custom_call.1} parent=1 // pred_check
      _
    $region51: #{tpu_custom_call.1} parent=1 // pred_check_branch
      %94 = sbr.rel (0) target = $region53
    $region52: #{tpu_custom_call.1} parent=1 // pred_region
      %95 = dma.done [#allocation3], 16
    $region53: #{tpu_custom_call.1} parent=1 // pred_fallthru
      _
    // Predicated region
    $region54: #{tpu_custom_call.1} parent=1 // pred_check
      _
    $region55: #{tpu_custom_call.1} parent=1 // pred_check_branch
      %97 = sbr.rel (0) target = $region57
    $region56: #{tpu_custom_call.1} parent=1 // pred_region
      %98 = dma.done [#allocation6], 6144
    $region57: #{tpu_custom_call.1} parent=1 // pred_fallthru
      _
    // Predicated region
    $region58: #{tpu_custom_call.1} parent=1 // pred_check
      _
    $region59: #{tpu_custom_call.1} parent=1 // pred_check_branch
      %100 = sbr.rel (0) target = $region61
    $region60: #{tpu_custom_call.1} parent=1 // pred_region
      %101 = dma.done [#allocation6], 96
    $region61: #{tpu_custom_call.1} parent=1 // pred_fallthru
      _
    // Predicated region
    $region62: #{tpu_custom_call.1} parent=1 // pred_check
      _
    $region63: #{tpu_custom_call.1} parent=1 // pred_check_branch
      %103 = sbr.rel (0) target = $region65
    $region64: #{tpu_custom_call.1} parent=1 // pred_region
      %104 = dma.done [#allocation9], 6144
    $region65: #{tpu_custom_call.1} parent=1 // pred_fallthru
      _
    // Predicated region
    $region66: #{tpu_custom_call.1} parent=1 // pred_check
      _
    $region67: #{tpu_custom_call.1} parent=1 // pred_check_branch
      %106 = sbr.rel (0) target = $region69
    $region68: #{tpu_custom_call.1} parent=1 // pred_region
      %107 = dma.done [#allocation9], 1024
    $region69: #{tpu_custom_call.1} parent=1 // pred_fallthru
      _
    %v109 = vld [vmem:[%s0] sm:$0xf]
    %v110 = vld [vmem:[%s0 + $0x4] sm:$0xf]
    %v111 = vld [vmem:[%s0 + $0x8] sm:$0xf]
    %v112 = vld [vmem:[%s0 + $0xc] sm:$0xf]
    %v113 = vld [vmem:[%s0 + $0x10] sm:$0xf]
    %v114 = vld [vmem:[%s0 + $0x14] sm:$0xf]
    %v115 = vld [vmem:[%s0 + $0x18] sm:$0xf]
    %v116 = vld [vmem:[%s0 + $0x1c] sm:$0xf]
    %v117 = vld [vmem:[%s2] sm:$0xf]
    %v118 = vld [vmem:[%s2 + $0x4] sm:$0xf]
    %v119 = vld [vmem:[#allocation2] sm:$0x1]
    %v121 = vlaneseq
    %v122 = vshrl.u32 %v121, 7
    %v123 = vsub.s32 0, %v122
    %v124 = vrot.slane %v119, %v123
    %v134 = vunpack.c.l.b16 %v109
    %v135 = vunpack.c.l.b16 %v110
    %v136 = vunpack.c.l.b16 %v111
    %v137 = vunpack.c.l.b16 %v112
    %v138 = vunpack.c.l.b16 %v113
    %v139 = vunpack.c.l.b16 %v114
    %v140 = vunpack.c.l.b16 %v115
    %v141 = vunpack.c.l.b16 %v116
    %v142 = vpack.c.b16 %v135, %v134
    %v143 = vpack.c.b16 %v137, %v136
    %v144 = vpack.c.b16 %v139, %v138
    %v145 = vpack.c.b16 %v141, %v140
    %v148 = vunpack.c.l.b16 %v117
    %v149 = vunpack.c.l.b16 %v118
    %v150 = vpack.c.b16 %v149, %v148
    %vm152 = vcmask 130048
    %v154 = vsel %vm152, %v142, 0
    %v157 = vsel %vm152, %v143, 0
    %v160 = vsel %vm152, %v144, 0
    %v163 = vsel %vm152, %v145, 0
    %165 = vmatprep.subr.bf16.mxu0 0
    %166 = vmatpush1.bf16.msra.mxu0 0
    %167 = vmatprep.subr.bf16.mxu0 0
    %168 = vmatpush1.bf16.msra.mxu0 0
    %169 = vmatprep.subr.bf16.mxu0 0
    %170 = vmatpush1.bf16.msra.mxu0 0
    %171 = vmatprep.subr.bf16.mxu0 0
    %172 = vmatpush1.bf16.msra.mxu0 0
    %173 = vmatprep.subr.bf16.mxu0 0
    %174 = vmatpush1.bf16.msra.mxu0 0
    %175 = vmatprep.subr.bf16.mxu0 0
    %176 = vmatpush1.bf16.msra.mxu0 0
    %177 = vmatprep.subr.bf16.mxu0 0
    %178 = vmatpush1.bf16.msra.mxu0 0
    %179 = vmatprep.subr.bf16.mxu0 0
    %180 = vmatpush1.bf16.msra.mxu0 %v150
    %181 = vmatprep.subr.bf16.mxu0 0
    %182 = vmatpush2.bf16.msra.mxu0 0
    %183 = vmatprep.subr.bf16.mxu0 0
    %184 = vmatpush2.bf16.msra.mxu0 0
    %185 = vmatprep.subr.bf16.mxu0 0
    %186 = vmatpush2.bf16.msra.mxu0 0
    %187 = vmatprep.subr.bf16.mxu0 0
    %188 = vmatpush2.bf16.msra.mxu0 0
    %189 = vmatprep.subr.bf16.mxu0 0
    %190 = vmatpush2.bf16.msra.mxu0 0
    %191 = vmatprep.subr.bf16.mxu0 0
    %192 = vmatpush2.bf16.msra.mxu0 0
    %193 = vmatprep.subr.bf16.mxu0 0
    %194 = vmatpush2.bf16.msra.mxu0 0
    %195 = vmatprep.subr.bf16.mxu0 0
    %196 = vmatpush2.bf16.msra.mxu0 0
    %197 = vmatprep.mubr.bf16.mxu0 0
    %198 = vmatmul.mubr.bf16.gmra.mxu0 %v154
    %v199 = vpop.f32.mrf.mxu0
    %v200 = vadd.f32 %v124, %v199
    %v201 = vpop.f32.mrf.mxu0
    %v202 = vpop.f32.mrf.mxu0
    %v203 = vadd.f32 %v124, %v202
    %v204 = vpop.f32.mrf.mxu0
    %205 = vmatprep.mubr.bf16.mxu0 0
    %206 = vmatmul.mubr.bf16.gmra.mxu0 %v157
    %v207 = vpop.f32.mrf.mxu0
    %v208 = vadd.f32 %v124, %v207
    %v209 = vpop.f32.mrf.mxu0
    %v210 = vpop.f32.mrf.mxu0
    %v211 = vadd.f32 %v124, %v210
    %v212 = vpop.f32.mrf.mxu0
    %213 = vmatprep.mubr.bf16.mxu0 0
    %214 = vmatmul.mubr.bf16.gmra.mxu0 %v160
    %v215 = vpop.f32.mrf.mxu0
    %v216 = vadd.f32 %v124, %v215
    %v217 = vpop.f32.mrf.mxu0
    %v218 = vpop.f32.mrf.mxu0
    %v219 = vadd.f32 %v124, %v218
    %v220 = vpop.f32.mrf.mxu0
    %221 = vmatprep.mubr.bf16.mxu0 0
    %222 = vmatmul.mubr.bf16.gmra.mxu0 %v163
    %v223 = vpop.f32.mrf.mxu0
    %v224 = vadd.f32 %v124, %v223
    %v225 = vpop.f32.mrf.mxu0
    %v226 = vpop.f32.mrf.mxu0
    %v227 = vadd.f32 %v124, %v226
    %v228 = vpop.f32.mrf.mxu0
    %229 = vdwg.mxu0
    %v230 = vld [vmem:[#allocation10] sm:$0xff]
    %v231 = vld [vmem:[#allocation10 + $0x8] sm:$0xff]
    %v232 = vld [vmem:[#allocation10 + $0x10] sm:$0xff]
    %v233 = vld [vmem:[#allocation10 + $0x18] sm:$0xff]
    %v234 = vld [vmem:[#allocation10 + $0x20] sm:$0xff]
    %v235 = vld [vmem:[#allocation10 + $0x28] sm:$0xff]
    %v236 = vld [vmem:[#allocation10 + $0x30] sm:$0xff]
    %v237 = vld [vmem:[#allocation10 + $0x38] sm:$0xff]
    %v238 = vadd.f32 %v200, %v230
    %v239 = vadd.f32 %v203, %v231
    %v240 = vadd.f32 %v208, %v232
    %v241 = vadd.f32 %v211, %v233
    %v242 = vadd.f32 %v216, %v234
    %v243 = vadd.f32 %v219, %v235
    %v244 = vadd.f32 %v224, %v236
    %v245 = vadd.f32 %v227, %v237
    %v246 = vld [vmem:[%s1] sm:$0xf]
    %v247 = vld [vmem:[%s1 + $0x4] sm:$0xf]
    %v248 = vld [vmem:[%s1 + $0x8] sm:$0xf]
    %v249 = vld [vmem:[%s1 + $0xc] sm:$0xf]
    %v250 = vld [vmem:[%s1 + $0x10] sm:$0xf]
    %v251 = vld [vmem:[%s1 + $0x14] sm:$0xf]
    %v252 = vld [vmem:[%s1 + $0x18] sm:$0xf]
    %v253 = vld [vmem:[%s1 + $0x1c] sm:$0xf]
    %v254 = vmax.f32 %v238, 0.0
    %v255 = vmax.f32 %v239, 0.0
    %v256 = vmax.f32 %v240, 0.0
    %v257 = vmax.f32 %v241, 0.0
    %v258 = vmax.f32 %v242, 0.0
    %v259 = vmax.f32 %v243, 0.0
    %v260 = vmax.f32 %v244, 0.0
    %v261 = vmax.f32 %v245, 0.0
    %v262 = vpack.c.bf16 %v255, %v254
    %v263 = vpack.c.bf16 %v257, %v256
    %v264 = vpack.c.bf16 %v259, %v258
    %v265 = vpack.c.bf16 %v261, %v260
    %v274 = vunpack.c.l.b16 %v246
    %v275 = vunpack.c.l.b16 %v247
    %v276 = vunpack.c.l.b16 %v248
    %v277 = vunpack.c.l.b16 %v249
    %v278 = vunpack.c.l.b16 %v250
    %v279 = vunpack.c.l.b16 %v251
    %v280 = vunpack.c.l.b16 %v252
    %v281 = vunpack.c.l.b16 %v253
    %v282 = vpack.c.b16 %v275, %v274
    %v283 = vpack.c.b16 %v277, %v276
    %v284 = vpack.c.b16 %v279, %v278
    %v285 = vpack.c.b16 %v281, %v280
    %vm286 = vcmask 523264
    %v288 = vsel %vm286, %v282, 0
    %v291 = vsel %vm286, %v283, 0
    %v294 = vsel %vm286, %v284, 0
    %v297 = vsel %vm286, %v285, 0
    %299 = vmatprep.subr.bf16.mxu0 0
    %300 = vmatpush1.bf16.msra.mxu0 0
    %301 = vmatprep.subr.bf16.mxu0 0
    %302 = vmatpush1.bf16.msra.mxu0 0
    %303 = vmatprep.subr.bf16.mxu0 0
    %304 = vmatpush1.bf16.msra.mxu0 0
    %305 = vmatprep.subr.bf16.mxu0 0
    %306 = vmatpush1.bf16.msra.mxu0 0
    %307 = vmatprep.subr.bf16.mxu0 0
    %308 = vmatpush1.bf16.msra.mxu0 %v265
    %309 = vmatprep.subr.bf16.mxu0 0
    %310 = vmatpush1.bf16.msra.mxu0 %v264
    %311 = vmatprep.subr.bf16.mxu0 0
    %312 = vmatpush1.bf16.msra.mxu0 %v263
    %313 = vmatprep.subr.bf16.mxu0 0
    %314 = vmatpush1.bf16.msra.mxu0 %v262
    %315 = vmatprep.subr.bf16.mxu0 0
    %316 = vmatpush2.bf16.msra.mxu0 0
    %317 = vmatprep.subr.bf16.mxu0 0
    %318 = vmatpush2.bf16.msra.mxu0 0
    %319 = vmatprep.subr.bf16.mxu0 0
    %320 = vmatpush2.bf16.msra.mxu0 0
    %321 = vmatprep.subr.bf16.mxu0 0
    %322 = vmatpush2.bf16.msra.mxu0 0
    %323 = vmatprep.subr.bf16.mxu0 0
    %324 = vmatpush2.bf16.msra.mxu0 0
    %325 = vmatprep.subr.bf16.mxu0 0
    %326 = vmatpush2.bf16.msra.mxu0 0
    %327 = vmatprep.subr.bf16.mxu0 0
    %328 = vmatpush2.bf16.msra.mxu0 0
    %329 = vmatprep.subr.bf16.mxu0 0
    %330 = vmatpush2.bf16.msra.mxu0 0
    %331 = vmatprep.mubr.bf16.mxu0 0
    %332 = vmatmul.mubr.bf16.gmra.mxu0 %v288
    %v333 = vpop.f32.mrf.mxu0
    %v334 = vadd.f32 0.0, %v333
    %v335 = vpop.f32.mrf.mxu0
    %v336 = vpop.f32.mrf.mxu0
    %v337 = vadd.f32 0.0, %v336
    %v338 = vpop.f32.mrf.mxu0
    %339 = vmatprep.mubr.bf16.mxu0 0
    %340 = vmatmul.mubr.bf16.gmra.mxu0 %v291
    %v341 = vpop.f32.mrf.mxu0
    %v342 = vadd.f32 0.0, %v341
    %v343 = vpop.f32.mrf.mxu0
    %v344 = vpop.f32.mrf.mxu0
    %v345 = vadd.f32 0.0, %v344
    %v346 = vpop.f32.mrf.mxu0
    %347 = vmatprep.mubr.bf16.mxu0 0
    %348 = vmatmul.mubr.bf16.gmra.mxu0 %v294
    %v349 = vpop.f32.mrf.mxu0
    %v350 = vadd.f32 0.0, %v349
    %v351 = vpop.f32.mrf.mxu0
    %v352 = vpop.f32.mrf.mxu0
    %v353 = vadd.f32 0.0, %v352
    %v354 = vpop.f32.mrf.mxu0
    %355 = vmatprep.mubr.bf16.mxu0 0
    %356 = vmatmul.mubr.bf16.gmra.mxu0 %v297
    %v357 = vpop.f32.mrf.mxu0
    %v358 = vadd.f32 0.0, %v357
    %v359 = vpop.f32.mrf.mxu0
    %v360 = vpop.f32.mrf.mxu0
    %v361 = vadd.f32 0.0, %v360
    %v362 = vpop.f32.mrf.mxu0
    %363 = vdwg.mxu0
    %v364 = vadd.f32 %v238, %v334
    %v365 = vadd.f32 %v239, %v337
    %v366 = vadd.f32 %v240, %v342
    %v367 = vadd.f32 %v241, %v345
    %v368 = vadd.f32 %v242, %v350
    %v369 = vadd.f32 %v243, %v353
    %v370 = vadd.f32 %v244, %v358
    %v371 = vadd.f32 %v245, %v361
    %v372 = vpack.c.bf16 %v365, %v364
    %v373 = vpack.c.bf16 %v367, %v366
    %v374 = vpack.c.bf16 %v369, %v368
    %v375 = vpack.c.bf16 %v371, %v370
    %v376 = vld [vmem:[#allocation5] sm:$0xff]
    %v377 = vld [vmem:[#allocation5 + $0x8] sm:$0xff]
    %v378 = vld [vmem:[#allocation5 + $0x10] sm:$0xff]
    %v379 = vld [vmem:[#allocation5 + $0x18] sm:$0xff]
    %v380 = vld [vmem:[#allocation5 + $0x20] sm:$0xff]
    %v381 = vld [vmem:[#allocation5 + $0x28] sm:$0xff]
    %v382 = vld [vmem:[#allocation5 + $0x30] sm:$0xff]
    %v383 = vld [vmem:[#allocation5 + $0x38] sm:$0xff]
    %v384 = vld [vmem:[#allocation5 + $0x40] sm:$0xff]
    %v385 = vld [vmem:[#allocation5 + $0x48] sm:$0xff]
    %v386 = vld [vmem:[#allocation5 + $0x50] sm:$0xff]
    %v387 = vld [vmem:[#allocation5 + $0x58] sm:$0xff]
    %v388 = vld [vmem:[#allocation5 + $0x60] sm:$0xff]
    %v389 = vld [vmem:[#allocation5 + $0x68] sm:$0xff]
    %v390 = vld [vmem:[#allocation5 + $0x70] sm:$0xff]
    %v391 = vld [vmem:[#allocation5 + $0x78] sm:$0xff]
    %v408 = vunpack.c.l.b16 %v376
    %v409 = vunpack.c.h.b16 %v376
    %v410 = vunpack.c.l.b16 %v377
    %v411 = vunpack.c.h.b16 %v377
    %v412 = vunpack.c.l.b16 %v378
    %v413 = vunpack.c.h.b16 %v378
    %v414 = vunpack.c.l.b16 %v379
    %v415 = vunpack.c.h.b16 %v379
    %v416 = vunpack.c.l.b16 %v380
    %v417 = vunpack.c.h.b16 %v380
    %v418 = vunpack.c.l.b16 %v381
    %v419 = vunpack.c.h.b16 %v381
    %v420 = vunpack.c.l.b16 %v382
    %v421 = vunpack.c.h.b16 %v382
    %v422 = vunpack.c.l.b16 %v383
    %v423 = vunpack.c.h.b16 %v383
    %v424 = vunpack.c.l.b16 %v384
    %v425 = vunpack.c.h.b16 %v384
    %v426 = vunpack.c.l.b16 %v385
    %v427 = vunpack.c.h.b16 %v385
    %v428 = vunpack.c.l.b16 %v386
    %v429 = vunpack.c.h.b16 %v386
    %v430 = vunpack.c.l.b16 %v387
    %v431 = vunpack.c.h.b16 %v387
    %v432 = vunpack.c.l.b16 %v388
    %v433 = vunpack.c.h.b16 %v388
    %v434 = vunpack.c.l.b16 %v389
    %v435 = vunpack.c.h.b16 %v389
    %v436 = vunpack.c.l.b16 %v390
    %v437 = vunpack.c.h.b16 %v390
    %v438 = vunpack.c.l.b16 %v391
    %v439 = vunpack.c.h.b16 %v391
    %v440 = vpack.c.b16 %v410, %v408
    %v441 = vpack.c.b16 %v411, %v409
    %v442 = vpack.c.b16 %v414, %v412
    %v443 = vpack.c.b16 %v415, %v413
    %v444 = vpack.c.b16 %v418, %v416
    %v445 = vpack.c.b16 %v419, %v417
    %v446 = vpack.c.b16 %v422, %v420
    %v447 = vpack.c.b16 %v423, %v421
    %v448 = vpack.c.b16 %v426, %v424
    %v449 = vpack.c.b16 %v427, %v425
    %v450 = vpack.c.b16 %v430, %v428
    %v451 = vpack.c.b16 %v431, %v429
    %v452 = vpack.c.b16 %v434, %v432
    %v453 = vpack.c.b16 %v435, %v433
    %v454 = vpack.c.b16 %v438, %v436
    %v455 = vpack.c.b16 %v439, %v437
    %472 = vmatprep.subr.bf16.mxu0 %v455
    %473 = vmatpush1.bf16.msra.mxu0 %v454
    %474 = vmatprep.subr.bf16.mxu0 %v453
    %475 = vmatpush1.bf16.msra.mxu0 %v452
    %476 = vmatprep.subr.bf16.mxu0 %v451
    %477 = vmatpush1.bf16.msra.mxu0 %v450
    %478 = vmatprep.subr.bf16.mxu0 %v449
    %479 = vmatpush1.bf16.msra.mxu0 %v448
    %480 = vmatprep.subr.bf16.mxu0 %v447
    %481 = vmatpush1.bf16.msra.mxu0 %v446
    %482 = vmatprep.subr.bf16.mxu0 %v445
    %483 = vmatpush1.bf16.msra.mxu0 %v444
    %484 = vmatprep.subr.bf16.mxu0 %v443
    %485 = vmatpush1.bf16.msra.mxu0 %v442
    %486 = vmatprep.subr.bf16.mxu0 %v441
    %487 = vmatpush1.bf16.msra.mxu0 %v440
    %488 = vmatprep.subr.bf16.mxu0 0
    %489 = vmatpush2.bf16.msra.mxu0 0
    %490 = vmatprep.subr.bf16.mxu0 0
    %491 = vmatpush2.bf16.msra.mxu0 0
    %492 = vmatprep.subr.bf16.mxu0 0
    %493 = vmatpush2.bf16.msra.mxu0 0
    %494 = vmatprep.subr.bf16.mxu0 0
    %495 = vmatpush2.bf16.msra.mxu0 0
    %496 = vmatprep.subr.bf16.mxu0 0
    %497 = vmatpush2.bf16.msra.mxu0 0
    %498 = vmatprep.subr.bf16.mxu0 0
    %499 = vmatpush2.bf16.msra.mxu0 0
    %500 = vmatprep.subr.bf16.mxu0 0
    %501 = vmatpush2.bf16.msra.mxu0 0
    %502 = vmatprep.subr.bf16.mxu0 0
    %503 = vmatpush2.bf16.msra.mxu0 0
    %504 = vmatprep.mubr.bf16.mxu0 0
    %505 = vmatmul.mubr.bf16.gmra.mxu0 %v372
    %v506 = vpop.f32.mrf.mxu0
    %v507 = vadd.f32 0.0, %v506
    %v508 = vpop.f32.mrf.mxu0
    %v509 = vadd.f32 0.0, %v508
    %v510 = vpop.f32.mrf.mxu0
    %v511 = vadd.f32 0.0, %v510
    %v512 = vpop.f32.mrf.mxu0
    %v513 = vadd.f32 0.0, %v512
    %514 = vmatprep.mubr.bf16.mxu0 0
    %515 = vmatmul.mubr.bf16.gmra.mxu0 %v373
    %v516 = vpop.f32.mrf.mxu0
    %v517 = vadd.f32 0.0, %v516
    %v518 = vpop.f32.mrf.mxu0
    %v519 = vadd.f32 0.0, %v518
    %v520 = vpop.f32.mrf.mxu0
    %v521 = vadd.f32 0.0, %v520
    %v522 = vpop.f32.mrf.mxu0
    %v523 = vadd.f32 0.0, %v522
    %524 = vmatprep.mubr.bf16.mxu0 0
    %525 = vmatmul.mubr.bf16.gmra.mxu0 %v374
    %v526 = vpop.f32.mrf.mxu0
    %v527 = vadd.f32 0.0, %v526
    %v528 = vpop.f32.mrf.mxu0
    %v529 = vadd.f32 0.0, %v528
    %v530 = vpop.f32.mrf.mxu0
    %v531 = vadd.f32 0.0, %v530
    %v532 = vpop.f32.mrf.mxu0
    %v533 = vadd.f32 0.0, %v532
    %534 = vmatprep.mubr.bf16.mxu0 0
    %535 = vmatmul.mubr.bf16.gmra.mxu0 %v375
    %v536 = vpop.f32.mrf.mxu0
    %v537 = vadd.f32 0.0, %v536
    %v538 = vpop.f32.mrf.mxu0
    %v539 = vadd.f32 0.0, %v538
    %v540 = vpop.f32.mrf.mxu0
    %v541 = vadd.f32 0.0, %v540
    %v542 = vpop.f32.mrf.mxu0
    %v543 = vadd.f32 0.0, %v542
    %544 = vdwg.mxu0
    %v545 = vld [vmem:[%s5] sm:$0x3]
    %v547 = vlaneseq
    %v548 = vshrl.u32 %v547, 7
    %v549 = vsub.s32 0, %v548
    %v550 = vrot.slane %v545, %v549
    %v551 = vlaneseq
    %v552 = vshrl.u32 %v551, 7
    %v553 = vsub.s32 1, %v552
    %v554 = vrot.slane %v545, %v553
    %v557 = vmul.f32 %v507, %v550
    %v558 = vmul.f32 %v509, %v554
    %v559 = vmul.f32 %v511, %v550
    %v560 = vmul.f32 %v513, %v554
    %v561 = vmul.f32 %v517, %v550
    %v562 = vmul.f32 %v519, %v554
    %v563 = vmul.f32 %v521, %v550
    %v564 = vmul.f32 %v523, %v554
    %v565 = vmul.f32 %v527, %v550
    %v566 = vmul.f32 %v529, %v554
    %v567 = vmul.f32 %v531, %v550
    %v568 = vmul.f32 %v533, %v554
    %v569 = vmul.f32 %v537, %v550
    %v570 = vmul.f32 %v539, %v554
    %v571 = vmul.f32 %v541, %v550
    %v572 = vmul.f32 %v543, %v554
    %v573 = vld [vmem:[#allocation7] sm:$0x3]
    %v575 = vlaneseq
    %v576 = vshrl.u32 %v575, 7
    %v577 = vsub.s32 0, %v576
    %v578 = vrot.slane %v573, %v577
    %v579 = vlaneseq
    %v580 = vshrl.u32 %v579, 7
    %v581 = vsub.s32 1, %v580
    %v582 = vrot.slane %v573, %v581
    %v585 = vadd.f32 %v557, %v578
    %v586 = vadd.f32 %v558, %v582
    %v587 = vadd.f32 %v559, %v578
    %v588 = vadd.f32 %v560, %v582
    %v589 = vadd.f32 %v561, %v578
    %v590 = vadd.f32 %v562, %v582
    %v591 = vadd.f32 %v563, %v578
    %v592 = vadd.f32 %v564, %v582
    %v593 = vadd.f32 %v565, %v578
    %v594 = vadd.f32 %v566, %v582
    %v595 = vadd.f32 %v567, %v578
    %v596 = vadd.f32 %v568, %v582
    %v597 = vadd.f32 %v569, %v578
    %v598 = vadd.f32 %v570, %v582
    %v599 = vadd.f32 %v571, %v578
    %v600 = vadd.f32 %v572, %v582
    %v601 = vmax.f32 %v585, 0.0
    %v602 = vmax.f32 %v586, 0.0
    %v603 = vmax.f32 %v587, 0.0
    %v604 = vmax.f32 %v588, 0.0
    %v605 = vmax.f32 %v589, 0.0
    %v606 = vmax.f32 %v590, 0.0
    %v607 = vmax.f32 %v591, 0.0
    %v608 = vmax.f32 %v592, 0.0
    %v609 = vmax.f32 %v593, 0.0
    %v610 = vmax.f32 %v594, 0.0
    %v611 = vmax.f32 %v595, 0.0
    %v612 = vmax.f32 %v596, 0.0
    %v613 = vmax.f32 %v597, 0.0
    %v614 = vmax.f32 %v598, 0.0
    %v615 = vmax.f32 %v599, 0.0
    %v616 = vmax.f32 %v600, 0.0
    %v617 = vpack.c.bf16 %v603, %v601
    %v618 = vpack.c.bf16 %v604, %v602
    %v619 = vpack.c.bf16 %v607, %v605
    %v620 = vpack.c.bf16 %v608, %v606
    %v621 = vpack.c.bf16 %v611, %v609
    %v622 = vpack.c.bf16 %v612, %v610
    %v623 = vpack.c.bf16 %v615, %v613
    %v624 = vpack.c.bf16 %v616, %v614
    %v625 = vld [vmem:[#allocation8] sm:$0xf]
    %v626 = vld [vmem:[#allocation8 + $0x4] sm:$0xf]
    %v627 = vld [vmem:[#allocation8 + $0x8] sm:$0xf]
    %v628 = vld [vmem:[#allocation8 + $0xc] sm:$0xf]
    %v629 = vld [vmem:[#allocation8 + $0x10] sm:$0xf]
    %v630 = vld [vmem:[#allocation8 + $0x14] sm:$0xf]
    %v631 = vld [vmem:[#allocation8 + $0x18] sm:$0xf]
    %v632 = vld [vmem:[#allocation8 + $0x1c] sm:$0xf]
    %v633 = vld [vmem:[#allocation8 + $0x20] sm:$0xf]
    %v634 = vld [vmem:[#allocation8 + $0x24] sm:$0xf]
    %v635 = vld [vmem:[#allocation8 + $0x28] sm:$0xf]
    %v636 = vld [vmem:[#allocation8 + $0x2c] sm:$0xf]
    %v637 = vld [vmem:[#allocation8 + $0x30] sm:$0xf]
    %v638 = vld [vmem:[#allocation8 + $0x34] sm:$0xf]
    %v639 = vld [vmem:[#allocation8 + $0x38] sm:$0xf]
    %v640 = vld [vmem:[#allocation8 + $0x3c] sm:$0xf]
    %v641 = vld [vmem:[#allocation8 + $0x40] sm:$0xf]
    %v642 = vld [vmem:[#allocation8 + $0x44] sm:$0xf]
    %v643 = vld [vmem:[#allocation8 + $0x48] sm:$0xf]
    %v644 = vld [vmem:[#allocation8 + $0x4c] sm:$0xf]
    %v645 = vld [vmem:[#allocation8 + $0x50] sm:$0xf]
    %v646 = vld [vmem:[#allocation8 + $0x54] sm:$0xf]
    %v647 = vld [vmem:[#allocation8 + $0x58] sm:$0xf]
    %v648 = vld [vmem:[#allocation8 + $0x5c] sm:$0xf]
    %v649 = vld [vmem:[#allocation8 + $0x60] sm:$0xf]
    %v650 = vld [vmem:[#allocation8 + $0x64] sm:$0xf]
    %v651 = vld [vmem:[#allocation8 + $0x68] sm:$0xf]
    %v652 = vld [vmem:[#allocation8 + $0x6c] sm:$0xf]
    %v653 = vld [vmem:[#allocation8 + $0x70] sm:$0xf]
    %v654 = vld [vmem:[#allocation8 + $0x74] sm:$0xf]
    %v655 = vld [vmem:[#allocation8 + $0x78] sm:$0xf]
    %v656 = vld [vmem:[#allocation8 + $0x7c] sm:$0xf]
    %v689 = vunpack.c.l.b16 %v625
    %v690 = vunpack.c.l.b16 %v626
    %v691 = vunpack.c.l.b16 %v627
    %v692 = vunpack.c.l.b16 %v628
    %v693 = vunpack.c.l.b16 %v629
    %v694 = vunpack.c.l.b16 %v630
    %v695 = vunpack.c.l.b16 %v631
    %v696 = vunpack.c.l.b16 %v632
    %v697 = vunpack.c.l.b16 %v633
    %v698 = vunpack.c.l.b16 %v634
    %v699 = vunpack.c.l.b16 %v635
    %v700 = vunpack.c.l.b16 %v636
    %v701 = vunpack.c.l.b16 %v637
    %v702 = vunpack.c.l.b16 %v638
    %v703 = vunpack.c.l.b16 %v639
    %v704 = vunpack.c.l.b16 %v640
    %v705 = vunpack.c.l.b16 %v641
    %v706 = vunpack.c.l.b16 %v642
    %v707 = vunpack.c.l.b16 %v643
    %v708 = vunpack.c.l.b16 %v644
    %v709 = vunpack.c.l.b16 %v645
    %v710 = vunpack.c.l.b16 %v646
    %v711 = vunpack.c.l.b16 %v647
    %v712 = vunpack.c.l.b16 %v648
    %v713 = vunpack.c.l.b16 %v649
    %v714 = vunpack.c.l.b16 %v650
    %v715 = vunpack.c.l.b16 %v651
    %v716 = vunpack.c.l.b16 %v652
    %v717 = vunpack.c.l.b16 %v653
    %v718 = vunpack.c.l.b16 %v654
    %v719 = vunpack.c.l.b16 %v655
    %v720 = vunpack.c.l.b16 %v656
    %v721 = vpack.c.b16 %v690, %v689
    %v722 = vpack.c.b16 %v692, %v691
    %v723 = vpack.c.b16 %v694, %v693
    %v724 = vpack.c.b16 %v696, %v695
    %v725 = vpack.c.b16 %v698, %v697
    %v726 = vpack.c.b16 %v700, %v699
    %v727 = vpack.c.b16 %v702, %v701
    %v728 = vpack.c.b16 %v704, %v703
    %v729 = vpack.c.b16 %v706, %v705
    %v730 = vpack.c.b16 %v708, %v707
    %v731 = vpack.c.b16 %v710, %v709
    %v732 = vpack.c.b16 %v712, %v711
    %v733 = vpack.c.b16 %v714, %v713
    %v734 = vpack.c.b16 %v716, %v715
    %v735 = vpack.c.b16 %v718, %v717
    %v736 = vpack.c.b16 %v720, %v719
    %753 = vmatprep.subr.bf16.mxu0 0
    %754 = vmatpush1.bf16.msra.mxu0 %v728
    %755 = vmatprep.subr.bf16.mxu0 0
    %756 = vmatpush1.bf16.msra.mxu0 %v727
    %757 = vmatprep.subr.bf16.mxu0 0
    %758 = vmatpush1.bf16.msra.mxu0 %v726
    %759 = vmatprep.subr.bf16.mxu0 0
    %760 = vmatpush1.bf16.msra.mxu0 %v725
    %761 = vmatprep.subr.bf16.mxu0 0
    %762 = vmatpush1.bf16.msra.mxu0 %v724
    %763 = vmatprep.subr.bf16.mxu0 0
    %764 = vmatpush1.bf16.msra.mxu0 %v723
    %765 = vmatprep.subr.bf16.mxu0 0
    %766 = vmatpush1.bf16.msra.mxu0 %v722
    %767 = vmatprep.subr.bf16.mxu0 0
    %768 = vmatpush1.bf16.msra.mxu0 %v721
    %769 = vmatprep.subr.bf16.mxu0 0
    %770 = vmatpush2.bf16.msra.mxu0 %v736
    %771 = vmatprep.subr.bf16.mxu0 0
    %772 = vmatpush2.bf16.msra.mxu0 %v735
    %773 = vmatprep.subr.bf16.mxu0 0
    %774 = vmatpush2.bf16.msra.mxu0 %v734
    %775 = vmatprep.subr.bf16.mxu0 0
    %776 = vmatpush2.bf16.msra.mxu0 %v733
    %777 = vmatprep.subr.bf16.mxu0 0
    %778 = vmatpush2.bf16.msra.mxu0 %v732
    %779 = vmatprep.subr.bf16.mxu0 0
    %780 = vmatpush2.bf16.msra.mxu0 %v731
    %781 = vmatprep.subr.bf16.mxu0 0
    %782 = vmatpush2.bf16.msra.mxu0 %v730
    %783 = vmatprep.subr.bf16.mxu0 0
    %784 = vmatpush2.bf16.msra.mxu0 %v729
    %785 = vmatprep.mubr.bf16.mxu0 %v618
    %786 = vmatmul.mubr.bf16.gmra.mxu0 %v617
    %v787 = vpop.f32.mrf.mxu0
    %v788 = vadd.f32 0.0, %v787
    %v789 = vpop.f32.mrf.mxu0
    %v790 = vpop.f32.mrf.mxu0
    %v791 = vadd.f32 0.0, %v790
    %v792 = vpop.f32.mrf.mxu0
    %793 = vmatprep.mubr.bf16.mxu0 %v620
    %794 = vmatmul.mubr.bf16.gmra.mxu0 %v619
    %v795 = vpop.f32.mrf.mxu0
    %v796 = vadd.f32 0.0, %v795
    %v797 = vpop.f32.mrf.mxu0
    %v798 = vpop.f32.mrf.mxu0
    %v799 = vadd.f32 0.0, %v798
    %v800 = vpop.f32.mrf.mxu0
    %801 = vmatprep.mubr.bf16.mxu0 %v622
    %802 = vmatmul.mubr.bf16.gmra.mxu0 %v621
    %v803 = vpop.f32.mrf.mxu0
    %v804 = vadd.f32 0.0, %v803
    %v805 = vpop.f32.mrf.mxu0
    %v806 = vpop.f32.mrf.mxu0
    %v807 = vadd.f32 0.0, %v806
    %v808 = vpop.f32.mrf.mxu0
    %809 = vmatprep.mubr.bf16.mxu0 %v624
    %810 = vmatmul.mubr.bf16.gmra.mxu0 %v623
    %v811 = vpop.f32.mrf.mxu0
    %v812 = vadd.f32 0.0, %v811
    %v813 = vpop.f32.mrf.mxu0
    %v814 = vpop.f32.mrf.mxu0
    %v815 = vadd.f32 0.0, %v814
    %v816 = vpop.f32.mrf.mxu0
    %817 = vdwg.mxu0
    %v818 = vld [vmem:[%s8] sm:$0x1]
    %v820 = vlaneseq
    %v821 = vshrl.u32 %v820, 7
    %v822 = vsub.s32 0, %v821
    %v823 = vrot.slane %v818, %v822
    %v825 = vmul.f32 %v788, %v823
    %v826 = vmul.f32 %v791, %v823
    %v827 = vmul.f32 %v796, %v823
    %v828 = vmul.f32 %v799, %v823
    %v829 = vmul.f32 %v804, %v823
    %v830 = vmul.f32 %v807, %v823
    %v831 = vmul.f32 %v812, %v823
    %v832 = vmul.f32 %v815, %v823
    %v833 = vld [vmem:[%s9] sm:$0x1]
    %v835 = vlaneseq
    %v836 = vshrl.u32 %v835, 7
    %v837 = vsub.s32 0, %v836
    %v838 = vrot.slane %v833, %v837
    %v840 = vadd.f32 %v825, %v838
    %v841 = vadd.f32 %v826, %v838
    %v842 = vadd.f32 %v827, %v838
    %v843 = vadd.f32 %v828, %v838
    %v844 = vadd.f32 %v829, %v838
    %v845 = vadd.f32 %v830, %v838
    %v846 = vadd.f32 %v831, %v838
    %v847 = vadd.f32 %v832, %v838
    %v848 = vmax.f32 %v840, 0.0
    %v849 = vmax.f32 %v841, 0.0
    %v850 = vmax.f32 %v842, 0.0
    %v851 = vmax.f32 %v843, 0.0
    %v852 = vmax.f32 %v844, 0.0
    %v853 = vmax.f32 %v845, 0.0
    %v854 = vmax.f32 %v846, 0.0
    %v855 = vmax.f32 %v847, 0.0
    %v856 = vmax.f32 %v848, 0.0
    %v857 = vmax.f32 %v849, 0.0
    %v858 = vmax.f32 %v850, 0.0
    %v859 = vmax.f32 %v851, 0.0
    %v860 = vmax.f32 %v852, 0.0
    %v861 = vmax.f32 %v853, 0.0
    %v862 = vmax.f32 %v854, 0.0
    %v863 = vmax.f32 %v855, 0.0
    %v864 = vpack.c.bf16 %v857, %v856
    %v865 = vpack.c.bf16 %v859, %v858
    %v866 = vpack.c.bf16 %v861, %v860
    %v867 = vpack.c.bf16 %v863, %v862
    %868 = vmatprep.subr.bf16.mxu0 0
    %869 = vmatpush1.bf16.msra.mxu0 0
    %870 = vmatprep.subr.bf16.mxu0 0
    %871 = vmatpush1.bf16.msra.mxu0 0
    %872 = vmatprep.subr.bf16.mxu0 0
    %873 = vmatpush1.bf16.msra.mxu0 0
    %874 = vmatprep.subr.bf16.mxu0 0
    %875 = vmatpush1.bf16.msra.mxu0 0
    %876 = vmatprep.subr.bf16.mxu0 0
    %877 = vmatpush1.bf16.msra.mxu0 %v867
    %878 = vmatprep.subr.bf16.mxu0 0
    %879 = vmatpush1.bf16.msra.mxu0 %v866
    %880 = vmatprep.subr.bf16.mxu0 0
    %881 = vmatpush1.bf16.msra.mxu0 %v865
    %882 = vmatprep.subr.bf16.mxu0 0
    %883 = vmatpush1.bf16.msra.mxu0 %v864
    %884 = vmatprep.subr.bf16.mxu0 0
    %885 = vmatpush2.bf16.msra.mxu0 0
    %886 = vmatprep.subr.bf16.mxu0 0
    %887 = vmatpush2.bf16.msra.mxu0 0
    %888 = vmatprep.subr.bf16.mxu0 0
    %889 = vmatpush2.bf16.msra.mxu0 0
    %890 = vmatprep.subr.bf16.mxu0 0
    %891 = vmatpush2.bf16.msra.mxu0 0
    %892 = vmatprep.subr.bf16.mxu0 0
    %893 = vmatpush2.bf16.msra.mxu0 0
    %894 = vmatprep.subr.bf16.mxu0 0
    %895 = vmatpush2.bf16.msra.mxu0 0
    %896 = vmatprep.subr.bf16.mxu0 0
    %897 = vmatpush2.bf16.msra.mxu0 0
    %898 = vmatprep.subr.bf16.mxu0 0
    %899 = vmatpush2.bf16.msra.mxu0 0
    %900 = vmatprep.mubr.bf16.mxu0 0
    %901 = vmatmul.mubr.bf16.gmra.mxu0 %v288
    %v902 = vpop.f32.mrf.mxu0
    %v903 = vadd.f32 0.0, %v902
    %v904 = vpop.f32.mrf.mxu0
    %v905 = vpop.f32.mrf.mxu0
    %v906 = vadd.f32 0.0, %v905
    %v907 = vpop.f32.mrf.mxu0
    %908 = vmatprep.mubr.bf16.mxu0 0
    %909 = vmatmul.mubr.bf16.gmra.mxu0 %v291
    %v910 = vpop.f32.mrf.mxu0
    %v911 = vadd.f32 0.0, %v910
    %v912 = vpop.f32.mrf.mxu0
    %v913 = vpop.f32.mrf.mxu0
    %v914 = vadd.f32 0.0, %v913
    %v915 = vpop.f32.mrf.mxu0
    %916 = vmatprep.mubr.bf16.mxu0 0
    %917 = vmatmul.mubr.bf16.gmra.mxu0 %v294
    %v918 = vpop.f32.mrf.mxu0
    %v919 = vadd.f32 0.0, %v918
    %v920 = vpop.f32.mrf.mxu0
    %v921 = vpop.f32.mrf.mxu0
    %v922 = vadd.f32 0.0, %v921
    %v923 = vpop.f32.mrf.mxu0
    %924 = vmatprep.mubr.bf16.mxu0 0
    %925 = vmatmul.mubr.bf16.gmra.mxu0 %v297
    %v926 = vpop.f32.mrf.mxu0
    %v927 = vadd.f32 0.0, %v926
    %v928 = vpop.f32.mrf.mxu0
    %v929 = vpop.f32.mrf.mxu0
    %v930 = vadd.f32 0.0, %v929
    %v931 = vpop.f32.mrf.mxu0
    %932 = vdwg.mxu0
    %v933 = vadd.f32 %v848, %v903
    %v934 = vadd.f32 %v849, %v906
    %v935 = vadd.f32 %v850, %v911
    %v936 = vadd.f32 %v851, %v914
    %v937 = vadd.f32 %v852, %v919
    %v938 = vadd.f32 %v853, %v922
    %v939 = vadd.f32 %v854, %v927
    %v940 = vadd.f32 %v855, %v930
    %v941 = vpack.c.bf16 %v934, %v933
    %v942 = vpack.c.bf16 %v936, %v935
    %v943 = vpack.c.bf16 %v938, %v937
    %v944 = vpack.c.bf16 %v940, %v939
    %s945 = scalar_lea.vmem [#allocation5], 128
    %v946 = vld [vmem:[%s945] sm:$0xff]
    %v947 = vld [vmem:[%s945 + $0x8] sm:$0xff]
    %v948 = vld [vmem:[%s945 + $0x10] sm:$0xff]
    %v949 = vld [vmem:[%s945 + $0x18] sm:$0xff]
    %v950 = vld [vmem:[%s945 + $0x20] sm:$0xff]
    %v951 = vld [vmem:[%s945 + $0x28] sm:$0xff]
    %v952 = vld [vmem:[%s945 + $0x30] sm:$0xff]
    %v953 = vld [vmem:[%s945 + $0x38] sm:$0xff]
    %v954 = vld [vmem:[%s945 + $0x40] sm:$0xff]
    %v955 = vld [vmem:[%s945 + $0x48] sm:$0xff]
    %v956 = vld [vmem:[%s945 + $0x50] sm:$0xff]
    %v957 = vld [vmem:[%s945 + $0x58] sm:$0xff]
    %v958 = vld [vmem:[%s945 + $0x60] sm:$0xff]
    %v959 = vld [vmem:[%s945 + $0x68] sm:$0xff]
    %v960 = vld [vmem:[%s945 + $0x70] sm:$0xff]
    %v961 = vld [vmem:[%s945 + $0x78] sm:$0xff]
    %v978 = vunpack.c.l.b16 %v946
    %v979 = vunpack.c.h.b16 %v946
    %v980 = vunpack.c.l.b16 %v947
    %v981 = vunpack.c.h.b16 %v947
    %v982 = vunpack.c.l.b16 %v948
    %v983 = vunpack.c.h.b16 %v948
    %v984 = vunpack.c.l.b16 %v949
    %v985 = vunpack.c.h.b16 %v949
    %v986 = vunpack.c.l.b16 %v950
    %v987 = vunpack.c.h.b16 %v950
    %v988 = vunpack.c.l.b16 %v951
    %v989 = vunpack.c.h.b16 %v951
    %v990 = vunpack.c.l.b16 %v952
    %v991 = vunpack.c.h.b16 %v952
    %v992 = vunpack.c.l.b16 %v953
    %v993 = vunpack.c.h.b16 %v953
    %v994 = vunpack.c.l.b16 %v954
    %v995 = vunpack.c.h.b16 %v954
    %v996 = vunpack.c.l.b16 %v955
    %v997 = vunpack.c.h.b16 %v955
    %v998 = vunpack.c.l.b16 %v956
    %v999 = vunpack.c.h.b16 %v956
    %v1000 = vunpack.c.l.b16 %v957
    %v1001 = vunpack.c.h.b16 %v957
    %v1002 = vunpack.c.l.b16 %v958
    %v1003 = vunpack.c.h.b16 %v958
    %v1004 = vunpack.c.l.b16 %v959
    %v1005 = vunpack.c.h.b16 %v959
    %v1006 = vunpack.c.l.b16 %v960
    %v1007 = vunpack.c.h.b16 %v960
    %v1008 = vunpack.c.l.b16 %v961
    %v1009 = vunpack.c.h.b16 %v961
    %v1010 = vpack.c.b16 %v980, %v978
    %v1011 = vpack.c.b16 %v981, %v979
    %v1012 = vpack.c.b16 %v984, %v982
    %v1013 = vpack.c.b16 %v985, %v983
    %v1014 = vpack.c.b16 %v988, %v986
    %v1015 = vpack.c.b16 %v989, %v987
    %v1016 = vpack.c.b16 %v992, %v990
    %v1017 = vpack.c.b16 %v993, %v991
    %v1018 = vpack.c.b16 %v996, %v994
    %v1019 = vpack.c.b16 %v997, %v995
    %v1020 = vpack.c.b16 %v1000, %v998
    %v1021 = vpack.c.b16 %v1001, %v999
    %v1022 = vpack.c.b16 %v1004, %v1002
    %v1023 = vpack.c.b16 %v1005, %v1003
    %v1024 = vpack.c.b16 %v1008, %v1006
    %v1025 = vpack.c.b16 %v1009, %v1007
    %1042 = vmatprep.subr.bf16.mxu0 %v1025
    %1043 = vmatpush1.bf16.msra.mxu0 %v1024
    %1044 = vmatprep.subr.bf16.mxu0 %v1023
    %1045 = vmatpush1.bf16.msra.mxu0 %v1022
    %1046 = vmatprep.subr.bf16.mxu0 %v1021
    %1047 = vmatpush1.bf16.msra.mxu0 %v1020
    %1048 = vmatprep.subr.bf16.mxu0 %v1019
    %1049 = vmatpush1.bf16.msra.mxu0 %v1018
    %1050 = vmatprep.subr.bf16.mxu0 %v1017
    %1051 = vmatpush1.bf16.msra.mxu0 %v1016
    %1052 = vmatprep.subr.bf16.mxu0 %v1015
    %1053 = vmatpush1.bf16.msra.mxu0 %v1014
    %1054 = vmatprep.subr.bf16.mxu0 %v1013
    %1055 = vmatpush1.bf16.msra.mxu0 %v1012
    %1056 = vmatprep.subr.bf16.mxu0 %v1011
    %1057 = vmatpush1.bf16.msra.mxu0 %v1010
    %1058 = vmatprep.subr.bf16.mxu0 0
    %1059 = vmatpush2.bf16.msra.mxu0 0
    %1060 = vmatprep.subr.bf16.mxu0 0
    %1061 = vmatpush2.bf16.msra.mxu0 0
    %1062 = vmatprep.subr.bf16.mxu0 0
    %1063 = vmatpush2.bf16.msra.mxu0 0
    %1064 = vmatprep.subr.bf16.mxu0 0
    %1065 = vmatpush2.bf16.msra.mxu0 0
    %1066 = vmatprep.subr.bf16.mxu0 0
    %1067 = vmatpush2.bf16.msra.mxu0 0
    %1068 = vmatprep.subr.bf16.mxu0 0
    %1069 = vmatpush2.bf16.msra.mxu0 0
    %1070 = vmatprep.subr.bf16.mxu0 0
    %1071 = vmatpush2.bf16.msra.mxu0 0
    %1072 = vmatprep.subr.bf16.mxu0 0
    %1073 = vmatpush2.bf16.msra.mxu0 0
    %1074 = vmatprep.mubr.bf16.mxu0 0
    %1075 = vmatmul.mubr.bf16.gmra.mxu0 %v941
    %v1076 = vpop.f32.mrf.mxu0
    %v1077 = vadd.f32 0.0, %v1076
    %v1078 = vpop.f32.mrf.mxu0
    %v1079 = vadd.f32 0.0, %v1078
    %v1080 = vpop.f32.mrf.mxu0
    %v1081 = vadd.f32 0.0, %v1080
    %v1082 = vpop.f32.mrf.mxu0
    %v1083 = vadd.f32 0.0, %v1082
    %1084 = vmatprep.mubr.bf16.mxu0 0
    %1085 = vmatmul.mubr.bf16.gmra.mxu0 %v942
    %v1086 = vpop.f32.mrf.mxu0
    %v1087 = vadd.f32 0.0, %v1086
    %v1088 = vpop.f32.mrf.mxu0
    %v1089 = vadd.f32 0.0, %v1088
    %v1090 = vpop.f32.mrf.mxu0
    %v1091 = vadd.f32 0.0, %v1090
    %v1092 = vpop.f32.mrf.mxu0
    %v1093 = vadd.f32 0.0, %v1092
    %1094 = vmatprep.mubr.bf16.mxu0 0
    %1095 = vmatmul.mubr.bf16.gmra.mxu0 %v943
    %v1096 = vpop.f32.mrf.mxu0
    %v1097 = vadd.f32 0.0, %v1096
    %v1098 = vpop.f32.mrf.mxu0
    %v1099 = vadd.f32 0.0, %v1098
    %v1100 = vpop.f32.mrf.mxu0
    %v1101 = vadd.f32 0.0, %v1100
    %v1102 = vpop.f32.mrf.mxu0
    %v1103 = vadd.f32 0.0, %v1102
    %1104 = vmatprep.mubr.bf16.mxu0 0
    %1105 = vmatmul.mubr.bf16.gmra.mxu0 %v944
    %v1106 = vpop.f32.mrf.mxu0
    %v1107 = vadd.f32 0.0, %v1106
    %v1108 = vpop.f32.mrf.mxu0
    %v1109 = vadd.f32 0.0, %v1108
    %v1110 = vpop.f32.mrf.mxu0
    %v1111 = vadd.f32 0.0, %v1110
    %v1112 = vpop.f32.mrf.mxu0
    %v1113 = vadd.f32 0.0, %v1112
    %1114 = vdwg.mxu0
    %s1115 = scalar_lea.vmem %s5, 2
    %v1116 = vld [vmem:[%s1115] sm:$0x3]
    %v1118 = vlaneseq
    %v1119 = vshrl.u32 %v1118, 7
    %v1120 = vsub.s32 0, %v1119
    %v1121 = vrot.slane %v1116, %v1120
    %v1122 = vlaneseq
    %v1123 = vshrl.u32 %v1122, 7
    %v1124 = vsub.s32 1, %v1123
    %v1125 = vrot.slane %v1116, %v1124
    %v1128 = vmul.f32 %v1077, %v1121
    %v1129 = vmul.f32 %v1079, %v1125
    %v1130 = vmul.f32 %v1081, %v1121
    %v1131 = vmul.f32 %v1083, %v1125
    %v1132 = vmul.f32 %v1087, %v1121
    %v1133 = vmul.f32 %v1089, %v1125
    %v1134 = vmul.f32 %v1091, %v1121
    %v1135 = vmul.f32 %v1093, %v1125
    %v1136 = vmul.f32 %v1097, %v1121
    %v1137 = vmul.f32 %v1099, %v1125
    %v1138 = vmul.f32 %v1101, %v1121
    %v1139 = vmul.f32 %v1103, %v1125
    %v1140 = vmul.f32 %v1107, %v1121
    %v1141 = vmul.f32 %v1109, %v1125
    %v1142 = vmul.f32 %v1111, %v1121
    %v1143 = vmul.f32 %v1113, %v1125
    %s1144 = scalar_lea.vmem [#allocation7], 2
    %v1145 = vld [vmem:[%s1144] sm:$0x3]
    %v1147 = vlaneseq
    %v1148 = vshrl.u32 %v1147, 7
    %v1149 = vsub.s32 0, %v1148
    %v1150 = vrot.slane %v1145, %v1149
    %v1151 = vlaneseq
    %v1152 = vshrl.u32 %v1151, 7
    %v1153 = vsub.s32 1, %v1152
    %v1154 = vrot.slane %v1145, %v1153
    %v1157 = vadd.f32 %v1128, %v1150
    %v1158 = vadd.f32 %v1129, %v1154
    %v1159 = vadd.f32 %v1130, %v1150
    %v1160 = vadd.f32 %v1131, %v1154
    %v1161 = vadd.f32 %v1132, %v1150
    %v1162 = vadd.f32 %v1133, %v1154
    %v1163 = vadd.f32 %v1134, %v1150
    %v1164 = vadd.f32 %v1135, %v1154
    %v1165 = vadd.f32 %v1136, %v1150
    %v1166 = vadd.f32 %v1137, %v1154
    %v1167 = vadd.f32 %v1138, %v1150
    %v1168 = vadd.f32 %v1139, %v1154
    %v1169 = vadd.f32 %v1140, %v1150
    %v1170 = vadd.f32 %v1141, %v1154
    %v1171 = vadd.f32 %v1142, %v1150
    %v1172 = vadd.f32 %v1143, %v1154
    %v1173 = vmax.f32 %v1157, 0.0
    %v1174 = vmax.f32 %v1158, 0.0
    %v1175 = vmax.f32 %v1159, 0.0
    %v1176 = vmax.f32 %v1160, 0.0
    %v1177 = vmax.f32 %v1161, 0.0
    %v1178 = vmax.f32 %v1162, 0.0
    %v1179 = vmax.f32 %v1163, 0.0
    %v1180 = vmax.f32 %v1164, 0.0
    %v1181 = vmax.f32 %v1165, 0.0
    %v1182 = vmax.f32 %v1166, 0.0
    %v1183 = vmax.f32 %v1167, 0.0
    %v1184 = vmax.f32 %v1168, 0.0
    %v1185 = vmax.f32 %v1169, 0.0
    %v1186 = vmax.f32 %v1170, 0.0
    %v1187 = vmax.f32 %v1171, 0.0
    %v1188 = vmax.f32 %v1172, 0.0
    %v1189 = vpack.c.bf16 %v1175, %v1173
    %v1190 = vpack.c.bf16 %v1176, %v1174
    %v1191 = vpack.c.bf16 %v1179, %v1177
    %v1192 = vpack.c.bf16 %v1180, %v1178
    %v1193 = vpack.c.bf16 %v1183, %v1181
    %v1194 = vpack.c.bf16 %v1184, %v1182
    %v1195 = vpack.c.bf16 %v1187, %v1185
    %v1196 = vpack.c.bf16 %v1188, %v1186
    %s1197 = scalar_lea.vmem [#allocation8], 128
    %v1198 = vld [vmem:[%s1197] sm:$0xf]
    %v1199 = vld [vmem:[%s1197 + $0x4] sm:$0xf]
    %v1200 = vld [vmem:[%s1197 + $0x8] sm:$0xf]
    %v1201 = vld [vmem:[%s1197 + $0xc] sm:$0xf]
    %v1202 = vld [vmem:[%s1197 + $0x10] sm:$0xf]
    %v1203 = vld [vmem:[%s1197 + $0x14] sm:$0xf]
    %v1204 = vld [vmem:[%s1197 + $0x18] sm:$0xf]
    %v1205 = vld [vmem:[%s1197 + $0x1c] sm:$0xf]
    %v1206 = vld [vmem:[%s1197 + $0x20] sm:$0xf]
    %v1207 = vld [vmem:[%s1197 + $0x24] sm:$0xf]
    %v1208 = vld [vmem:[%s1197 + $0x28] sm:$0xf]
    %v1209 = vld [vmem:[%s1197 + $0x2c] sm:$0xf]
    %v1210 = vld [vmem:[%s1197 + $0x30] sm:$0xf]
    %v1211 = vld [vmem:[%s1197 + $0x34] sm:$0xf]
    %v1212 = vld [vmem:[%s1197 + $0x38] sm:$0xf]
    %v1213 = vld [vmem:[%s1197 + $0x3c] sm:$0xf]
    %v1214 = vld [vmem:[%s1197 + $0x40] sm:$0xf]
    %v1215 = vld [vmem:[%s1197 + $0x44] sm:$0xf]
    %v1216 = vld [vmem:[%s1197 + $0x48] sm:$0xf]
    %v1217 = vld [vmem:[%s1197 + $0x4c] sm:$0xf]
    %v1218 = vld [vmem:[%s1197 + $0x50] sm:$0xf]
    %v1219 = vld [vmem:[%s1197 + $0x54] sm:$0xf]
    %v1220 = vld [vmem:[%s1197 + $0x58] sm:$0xf]
    %v1221 = vld [vmem:[%s1197 + $0x5c] sm:$0xf]
    %v1222 = vld [vmem:[%s1197 + $0x60] sm:$0xf]
    %v1223 = vld [vmem:[%s1197 + $0x64] sm:$0xf]
    %v1224 = vld [vmem:[%s1197 + $0x68] sm:$0xf]
    %v1225 = vld [vmem:[%s1197 + $0x6c] sm:$0xf]
    %v1226 = vld [vmem:[%s1197 + $0x70] sm:$0xf]
    %v1227 = vld [vmem:[%s1197 + $0x74] sm:$0xf]
    %v1228 = vld [vmem:[%s1197 + $0x78] sm:$0xf]
    %v1229 = vld [vmem:[%s1197 + $0x7c] sm:$0xf]
    %v1262 = vunpack.c.l.b16 %v1198
    %v1263 = vunpack.c.l.b16 %v1199
    %v1264 = vunpack.c.l.b16 %v1200
    %v1265 = vunpack.c.l.b16 %v1201
    %v1266 = vunpack.c.l.b16 %v1202
    %v1267 = vunpack.c.l.b16 %v1203
    %v1268 = vunpack.c.l.b16 %v1204
    %v1269 = vunpack.c.l.b16 %v1205
    %v1270 = vunpack.c.l.b16 %v1206
    %v1271 = vunpack.c.l.b16 %v1207
    %v1272 = vunpack.c.l.b16 %v1208
    %v1273 = vunpack.c.l.b16 %v1209
    %v1274 = vunpack.c.l.b16 %v1210
    %v1275 = vunpack.c.l.b16 %v1211
    %v1276 = vunpack.c.l.b16 %v1212
    %v1277 = vunpack.c.l.b16 %v1213
    %v1278 = vunpack.c.l.b16 %v1214
    %v1279 = vunpack.c.l.b16 %v1215
    %v1280 = vunpack.c.l.b16 %v1216
    %v1281 = vunpack.c.l.b16 %v1217
    %v1282 = vunpack.c.l.b16 %v1218
    %v1283 = vunpack.c.l.b16 %v1219
    %v1284 = vunpack.c.l.b16 %v1220
    %v1285 = vunpack.c.l.b16 %v1221
    %v1286 = vunpack.c.l.b16 %v1222
    %v1287 = vunpack.c.l.b16 %v1223
    %v1288 = vunpack.c.l.b16 %v1224
    %v1289 = vunpack.c.l.b16 %v1225
    %v1290 = vunpack.c.l.b16 %v1226
    %v1291 = vunpack.c.l.b16 %v1227
    %v1292 = vunpack.c.l.b16 %v1228
    %v1293 = vunpack.c.l.b16 %v1229
    %v1294 = vpack.c.b16 %v1263, %v1262
    %v1295 = vpack.c.b16 %v1265, %v1264
    %v1296 = vpack.c.b16 %v1267, %v1266
    %v1297 = vpack.c.b16 %v1269, %v1268
    %v1298 = vpack.c.b16 %v1271, %v1270
    %v1299 = vpack.c.b16 %v1273, %v1272
    %v1300 = vpack.c.b16 %v1275, %v1274
    %v1301 = vpack.c.b16 %v1277, %v1276
    %v1302 = vpack.c.b16 %v1279, %v1278
    %v1303 = vpack.c.b16 %v1281, %v1280
    %v1304 = vpack.c.b16 %v1283, %v1282
    %v1305 = vpack.c.b16 %v1285, %v1284
    %v1306 = vpack.c.b16 %v1287, %v1286
    %v1307 = vpack.c.b16 %v1289, %v1288
    %v1308 = vpack.c.b16 %v1291, %v1290
    %v1309 = vpack.c.b16 %v1293, %v1292
    %1326 = vmatprep.subr.bf16.mxu0 0
    %1327 = vmatpush1.bf16.msra.mxu0 %v1301
    %1328 = vmatprep.subr.bf16.mxu0 0
    %1329 = vmatpush1.bf16.msra.mxu0 %v1300
    %1330 = vmatprep.subr.bf16.mxu0 0
    %1331 = vmatpush1.bf16.msra.mxu0 %v1299
    %1332 = vmatprep.subr.bf16.mxu0 0
    %1333 = vmatpush1.bf16.msra.mxu0 %v1298
    %1334 = vmatprep.subr.bf16.mxu0 0
    %1335 = vmatpush1.bf16.msra.mxu0 %v1297
    %1336 = vmatprep.subr.bf16.mxu0 0
    %1337 = vmatpush1.bf16.msra.mxu0 %v1296
    %1338 = vmatprep.subr.bf16.mxu0 0
    %1339 = vmatpush1.bf16.msra.mxu0 %v1295
    %1340 = vmatprep.subr.bf16.mxu0 0
    %1341 = vmatpush1.bf16.msra.mxu0 %v1294
    %1342 = vmatprep.subr.bf16.mxu0 0
    %1343 = vmatpush2.bf16.msra.mxu0 %v1309
    %1344 = vmatprep.subr.bf16.mxu0 0
    %1345 = vmatpush2.bf16.msra.mxu0 %v1308
    %1346 = vmatprep.subr.bf16.mxu0 0
    %1347 = vmatpush2.bf16.msra.mxu0 %v1307
    %1348 = vmatprep.subr.bf16.mxu0 0
    %1349 = vmatpush2.bf16.msra.mxu0 %v1306
    %1350 = vmatprep.subr.bf16.mxu0 0
    %1351 = vmatpush2.bf16.msra.mxu0 %v1305
    %1352 = vmatprep.subr.bf16.mxu0 0
    %1353 = vmatpush2.bf16.msra.mxu0 %v1304
    %1354 = vmatprep.subr.bf16.mxu0 0
    %1355 = vmatpush2.bf16.msra.mxu0 %v1303
    %1356 = vmatprep.subr.bf16.mxu0 0
    %1357 = vmatpush2.bf16.msra.mxu0 %v1302
    %1358 = vmatprep.mubr.bf16.mxu0 %v1190
    %1359 = vmatmul.mubr.bf16.gmra.mxu0 %v1189
    %v1360 = vpop.f32.mrf.mxu0
    %v1361 = vadd.f32 0.0, %v1360
    %v1362 = vpop.f32.mrf.mxu0
    %v1363 = vpop.f32.mrf.mxu0
    %v1364 = vadd.f32 0.0, %v1363
    %v1365 = vpop.f32.mrf.mxu0
    %1366 = vmatprep.mubr.bf16.mxu0 %v1192
    %1367 = vmatmul.mubr.bf16.gmra.mxu0 %v1191
    %v1368 = vpop.f32.mrf.mxu0
    %v1369 = vadd.f32 0.0, %v1368
    %v1370 = vpop.f32.mrf.mxu0
    %v1371 = vpop.f32.mrf.mxu0
    %v1372 = vadd.f32 0.0, %v1371
    %v1373 = vpop.f32.mrf.mxu0
    %1374 = vmatprep.mubr.bf16.mxu0 %v1194
    %1375 = vmatmul.mubr.bf16.gmra.mxu0 %v1193
    %v1376 = vpop.f32.mrf.mxu0
    %v1377 = vadd.f32 0.0, %v1376
    %v1378 = vpop.f32.mrf.mxu0
    %v1379 = vpop.f32.mrf.mxu0
    %v1380 = vadd.f32 0.0, %v1379
    %v1381 = vpop.f32.mrf.mxu0
    %1382 = vmatprep.mubr.bf16.mxu0 %v1196
    %1383 = vmatmul.mubr.bf16.gmra.mxu0 %v1195
    %v1384 = vpop.f32.mrf.mxu0
    %v1385 = vadd.f32 0.0, %v1384
    %v1386 = vpop.f32.mrf.mxu0
    %v1387 = vpop.f32.mrf.mxu0
    %v1388 = vadd.f32 0.0, %v1387
    %v1389 = vpop.f32.mrf.mxu0
    %1390 = vdwg.mxu0
    %s1391 = scalar_lea.vmem %s8, 1
    %v1392 = vld [vmem:[%s1391] sm:$0x1]
    %v1394 = vlaneseq
    %v1395 = vshrl.u32 %v1394, 7
    %v1396 = vsub.s32 0, %v1395
    %v1397 = vrot.slane %v1392, %v1396
    %v1399 = vmul.f32 %v1361, %v1397
    %v1400 = vmul.f32 %v1364, %v1397
    %v1401 = vmul.f32 %v1369, %v1397
    %v1402 = vmul.f32 %v1372, %v1397
    %v1403 = vmul.f32 %v1377, %v1397
    %v1404 = vmul.f32 %v1380, %v1397
    %v1405 = vmul.f32 %v1385, %v1397
    %v1406 = vmul.f32 %v1388, %v1397
    %s1407 = scalar_lea.vmem %s9, 1
    %v1408 = vld [vmem:[%s1407] sm:$0x1]
    %v1410 = vlaneseq
    %v1411 = vshrl.u32 %v1410, 7
    %v1412 = vsub.s32 0, %v1411
    %v1413 = vrot.slane %v1408, %v1412
    %v1415 = vadd.f32 %v1399, %v1413
    %v1416 = vadd.f32 %v1400, %v1413
    %v1417 = vadd.f32 %v1401, %v1413
    %v1418 = vadd.f32 %v1402, %v1413
    %v1419 = vadd.f32 %v1403, %v1413
    %v1420 = vadd.f32 %v1404, %v1413
    %v1421 = vadd.f32 %v1405, %v1413
    %v1422 = vadd.f32 %v1406, %v1413
    %v1423 = vmax.f32 %v1415, 0.0
    %v1424 = vmax.f32 %v1416, 0.0
    %v1425 = vmax.f32 %v1417, 0.0
    %v1426 = vmax.f32 %v1418, 0.0
    %v1427 = vmax.f32 %v1419, 0.0
    %v1428 = vmax.f32 %v1420, 0.0
    %v1429 = vmax.f32 %v1421, 0.0
    %v1430 = vmax.f32 %v1422, 0.0
    %v1431 = vmax.f32 %v1423, 0.0
    %v1432 = vmax.f32 %v1424, 0.0
    %v1433 = vmax.f32 %v1425, 0.0
    %v1434 = vmax.f32 %v1426, 0.0
    %v1435 = vmax.f32 %v1427, 0.0
    %v1436 = vmax.f32 %v1428, 0.0
    %v1437 = vmax.f32 %v1429, 0.0
    %v1438 = vmax.f32 %v1430, 0.0
    %v1439 = vpack.c.bf16 %v1432, %v1431
    %v1440 = vpack.c.bf16 %v1434, %v1433
    %v1441 = vpack.c.bf16 %v1436, %v1435
    %v1442 = vpack.c.bf16 %v1438, %v1437
    %1443 = vmatprep.subr.bf16.mxu0 0
    %1444 = vmatpush1.bf16.msra.mxu0 0
    %1445 = vmatprep.subr.bf16.mxu0 0
    %1446 = vmatpush1.bf16.msra.mxu0 0
    %1447 = vmatprep.subr.bf16.mxu0 0
    %1448 = vmatpush1.bf16.msra.mxu0 0
    %1449 = vmatprep.subr.bf16.mxu0 0
    %1450 = vmatpush1.bf16.msra.mxu0 0
    %1451 = vmatprep.subr.bf16.mxu0 0
    %1452 = vmatpush1.bf16.msra.mxu0 %v1442
    %1453 = vmatprep.subr.bf16.mxu0 0
    %1454 = vmatpush1.bf16.msra.mxu0 %v1441
    %1455 = vmatprep.subr.bf16.mxu0 0
    %1456 = vmatpush1.bf16.msra.mxu0 %v1440
    %1457 = vmatprep.subr.bf16.mxu0 0
    %1458 = vmatpush1.bf16.msra.mxu0 %v1439
    %1459 = vmatprep.subr.bf16.mxu0 0
    %1460 = vmatpush2.bf16.msra.mxu0 0
    %1461 = vmatprep.subr.bf16.mxu0 0
    %1462 = vmatpush2.bf16.msra.mxu0 0
    %1463 = vmatprep.subr.bf16.mxu0 0
    %1464 = vmatpush2.bf16.msra.mxu0 0
    %1465 = vmatprep.subr.bf16.mxu0 0
    %1466 = vmatpush2.bf16.msra.mxu0 0
    %1467 = vmatprep.subr.bf16.mxu0 0
    %1468 = vmatpush2.bf16.msra.mxu0 0
    %1469 = vmatprep.subr.bf16.mxu0 0
    %1470 = vmatpush2.bf16.msra.mxu0 0
    %1471 = vmatprep.subr.bf16.mxu0 0
    %1472 = vmatpush2.bf16.msra.mxu0 0
    %1473 = vmatprep.subr.bf16.mxu0 0
    %1474 = vmatpush2.bf16.msra.mxu0 0
    %1475 = vmatprep.mubr.bf16.mxu0 0
    %1476 = vmatmul.mubr.bf16.gmra.mxu0 %v288
    %v1477 = vpop.f32.mrf.mxu0
    %v1478 = vadd.f32 0.0, %v1477
    %v1479 = vpop.f32.mrf.mxu0
    %v1480 = vpop.f32.mrf.mxu0
    %v1481 = vadd.f32 0.0, %v1480
    %v1482 = vpop.f32.mrf.mxu0
    %1483 = vmatprep.mubr.bf16.mxu0 0
    %1484 = vmatmul.mubr.bf16.gmra.mxu0 %v291
    %v1485 = vpop.f32.mrf.mxu0
    %v1486 = vadd.f32 0.0, %v1485
    %v1487 = vpop.f32.mrf.mxu0
    %v1488 = vpop.f32.mrf.mxu0
    %v1489 = vadd.f32 0.0, %v1488
    %v1490 = vpop.f32.mrf.mxu0
    %1491 = vmatprep.mubr.bf16.mxu0 0
    %1492 = vmatmul.mubr.bf16.gmra.mxu0 %v294
    %v1493 = vpop.f32.mrf.mxu0
    %v1494 = vadd.f32 0.0, %v1493
    %v1495 = vpop.f32.mrf.mxu0
    %v1496 = vpop.f32.mrf.mxu0
    %v1497 = vadd.f32 0.0, %v1496
    %v1498 = vpop.f32.mrf.mxu0
    %1499 = vmatprep.mubr.bf16.mxu0 0
    %1500 = vmatmul.mubr.bf16.gmra.mxu0 %v297
    %v1501 = vpop.f32.mrf.mxu0
    %v1502 = vadd.f32 0.0, %v1501
    %v1503 = vpop.f32.mrf.mxu0
    %v1504 = vpop.f32.mrf.mxu0
    %v1505 = vadd.f32 0.0, %v1504
    %v1506 = vpop.f32.mrf.mxu0
    %1507 = vdwg.mxu0
    %v1508 = vadd.f32 %v1423, %v1478
    %v1509 = vadd.f32 %v1424, %v1481
    %v1510 = vadd.f32 %v1425, %v1486
    %v1511 = vadd.f32 %v1426, %v1489
    %v1512 = vadd.f32 %v1427, %v1494
    %v1513 = vadd.f32 %v1428, %v1497
    %v1514 = vadd.f32 %v1429, %v1502
    %v1515 = vadd.f32 %v1430, %v1505
    %v1516 = vpack.c.bf16 %v1509, %v1508
    %v1517 = vpack.c.bf16 %v1511, %v1510
    %v1518 = vpack.c.bf16 %v1513, %v1512
    %v1519 = vpack.c.bf16 %v1515, %v1514
    %s1520 = scalar_lea.vmem [#allocation5], 256
    %v1521 = vld [vmem:[%s1520] sm:$0xff]
    %v1522 = vld [vmem:[%s1520 + $0x8] sm:$0xff]
    %v1523 = vld [vmem:[%s1520 + $0x10] sm:$0xff]
    %v1524 = vld [vmem:[%s1520 + $0x18] sm:$0xff]
    %v1525 = vld [vmem:[%s1520 + $0x20] sm:$0xff]
    %v1526 = vld [vmem:[%s1520 + $0x28] sm:$0xff]
    %v1527 = vld [vmem:[%s1520 + $0x30] sm:$0xff]
    %v1528 = vld [vmem:[%s1520 + $0x38] sm:$0xff]
    %v1529 = vld [vmem:[%s1520 + $0x40] sm:$0xff]
    %v1530 = vld [vmem:[%s1520 + $0x48] sm:$0xff]
    %v1531 = vld [vmem:[%s1520 + $0x50] sm:$0xff]
    %v1532 = vld [vmem:[%s1520 + $0x58] sm:$0xff]
    %v1533 = vld [vmem:[%s1520 + $0x60] sm:$0xff]
    %v1534 = vld [vmem:[%s1520 + $0x68] sm:$0xff]
    %v1535 = vld [vmem:[%s1520 + $0x70] sm:$0xff]
    %v1536 = vld [vmem:[%s1520 + $0x78] sm:$0xff]
    %v1553 = vunpack.c.l.b16 %v1521
    %v1554 = vunpack.c.h.b16 %v1521
    %v1555 = vunpack.c.l.b16 %v1522
    %v1556 = vunpack.c.h.b16 %v1522
    %v1557 = vunpack.c.l.b16 %v1523
    %v1558 = vunpack.c.h.b16 %v1523
    %v1559 = vunpack.c.l.b16 %v1524
    %v1560 = vunpack.c.h.b16 %v1524
    %v1561 = vunpack.c.l.b16 %v1525
    %v1562 = vunpack.c.h.b16 %v1525
    %v1563 = vunpack.c.l.b16 %v1526
    %v1564 = vunpack.c.h.b16 %v1526
    %v1565 = vunpack.c.l.b16 %v1527
    %v1566 = vunpack.c.h.b16 %v1527
    %v1567 = vunpack.c.l.b16 %v1528
    %v1568 = vunpack.c.h.b16 %v1528
    %v1569 = vunpack.c.l.b16 %v1529
    %v1570 = vunpack.c.h.b16 %v1529
    %v1571 = vunpack.c.l.b16 %v1530
    %v1572 = vunpack.c.h.b16 %v1530
    %v1573 = vunpack.c.l.b16 %v1531
    %v1574 = vunpack.c.h.b16 %v1531
    %v1575 = vunpack.c.l.b16 %v1532
    %v1576 = vunpack.c.h.b16 %v1532
    %v1577 = vunpack.c.l.b16 %v1533
    %v1578 = vunpack.c.h.b16 %v1533
    %v1579 = vunpack.c.l.b16 %v1534
    %v1580 = vunpack.c.h.b16 %v1534
    %v1581 = vunpack.c.l.b16 %v1535
    %v1582 = vunpack.c.h.b16 %v1535
    %v1583 = vunpack.c.l.b16 %v1536
    %v1584 = vunpack.c.h.b16 %v1536
    %v1585 = vpack.c.b16 %v1555, %v1553
    %v1586 = vpack.c.b16 %v1556, %v1554
    %v1587 = vpack.c.b16 %v1559, %v1557
    %v1588 = vpack.c.b16 %v1560, %v1558
    %v1589 = vpack.c.b16 %v1563, %v1561
    %v1590 = vpack.c.b16 %v1564, %v1562
    %v1591 = vpack.c.b16 %v1567, %v1565
    %v1592 = vpack.c.b16 %v1568, %v1566
    %v1593 = vpack.c.b16 %v1571, %v1569
    %v1594 = vpack.c.b16 %v1572, %v1570
    %v1595 = vpack.c.b16 %v1575, %v1573
    %v1596 = vpack.c.b16 %v1576, %v1574
    %v1597 = vpack.c.b16 %v1579, %v1577
    %v1598 = vpack.c.b16 %v1580, %v1578
    %v1599 = vpack.c.b16 %v1583, %v1581
    %v1600 = vpack.c.b16 %v1584, %v1582
    %1617 = vmatprep.subr.bf16.mxu0 %v1600
    %1618 = vmatpush1.bf16.msra.mxu0 %v1599
    %1619 = vmatprep.subr.bf16.mxu0 %v1598
    %1620 = vmatpush1.bf16.msra.mxu0 %v1597
    %1621 = vmatprep.subr.bf16.mxu0 %v1596
    %1622 = vmatpush1.bf16.msra.mxu0 %v1595
    %1623 = vmatprep.subr.bf16.mxu0 %v1594
    %1624 = vmatpush1.bf16.msra.mxu0 %v1593
    %1625 = vmatprep.subr.bf16.mxu0 %v1592
    %1626 = vmatpush1.bf16.msra.mxu0 %v1591
    %1627 = vmatprep.subr.bf16.mxu0 %v1590
    %1628 = vmatpush1.bf16.msra.mxu0 %v1589
    %1629 = vmatprep.subr.bf16.mxu0 %v1588
    %1630 = vmatpush1.bf16.msra.mxu0 %v1587
    %1631 = vmatprep.subr.bf16.mxu0 %v1586
    %1632 = vmatpush1.bf16.msra.mxu0 %v1585
    %1633 = vmatprep.subr.bf16.mxu0 0
    %1634 = vmatpush2.bf16.msra.mxu0 0
    %1635 = vmatprep.subr.bf16.mxu0 0
    %1636 = vmatpush2.bf16.msra.mxu0 0
    %1637 = vmatprep.subr.bf16.mxu0 0
    %1638 = vmatpush2.bf16.msra.mxu0 0
    %1639 = vmatprep.subr.bf16.mxu0 0
    %1640 = vmatpush2.bf16.msra.mxu0 0
    %1641 = vmatprep.subr.bf16.mxu0 0
    %1642 = vmatpush2.bf16.msra.mxu0 0
    %1643 = vmatprep.subr.bf16.mxu0 0
    %1644 = vmatpush2.bf16.msra.mxu0 0
    %1645 = vmatprep.subr.bf16.mxu0 0
    %1646 = vmatpush2.bf16.msra.mxu0 0
    %1647 = vmatprep.subr.bf16.mxu0 0
    %1648 = vmatpush2.bf16.msra.mxu0 0
    %1649 = vmatprep.mubr.bf16.mxu0 0
    %1650 = vmatmul.mubr.bf16.gmra.mxu0 %v1516
    %v1651 = vpop.f32.mrf.mxu0
    %v1652 = vadd.f32 0.0, %v1651
    %v1653 = vpop.f32.mrf.mxu0
    %v1654 = vadd.f32 0.0, %v1653
    %v1655 = vpop.f32.mrf.mxu0
    %v1656 = vadd.f32 0.0, %v1655
    %v1657 = vpop.f32.mrf.mxu0
    %v1658 = vadd.f32 0.0, %v1657
    %1659 = vmatprep.mubr.bf16.mxu0 0
    %1660 = vmatmul.mubr.bf16.gmra.mxu0 %v1517
    %v1661 = vpop.f32.mrf.mxu0
    %v1662 = vadd.f32 0.0, %v1661
    %v1663 = vpop.f32.mrf.mxu0
    %v1664 = vadd.f32 0.0, %v1663
    %v1665 = vpop.f32.mrf.mxu0
    %v1666 = vadd.f32 0.0, %v1665
    %v1667 = vpop.f32.mrf.mxu0
    %v1668 = vadd.f32 0.0, %v1667
    %1669 = vmatprep.mubr.bf16.mxu0 0
    %1670 = vmatmul.mubr.bf16.gmra.mxu0 %v1518
    %v1671 = vpop.f32.mrf.mxu0
    %v1672 = vadd.f32 0.0, %v1671
    %v1673 = vpop.f32.mrf.mxu0
    %v1674 = vadd.f32 0.0, %v1673
    %v1675 = vpop.f32.mrf.mxu0
    %v1676 = vadd.f32 0.0, %v1675
    %v1677 = vpop.f32.mrf.mxu0
    %v1678 = vadd.f32 0.0, %v1677
    %1679 = vmatprep.mubr.bf16.mxu0 0
    %1680 = vmatmul.mubr.bf16.gmra.mxu0 %v1519
    %v1681 = vpop.f32.mrf.mxu0
    %v1682 = vadd.f32 0.0, %v1681
    %v1683 = vpop.f32.mrf.mxu0
    %v1684 = vadd.f32 0.0, %v1683
    %v1685 = vpop.f32.mrf.mxu0
    %v1686 = vadd.f32 0.0, %v1685
    %v1687 = vpop.f32.mrf.mxu0
    %v1688 = vadd.f32 0.0, %v1687
    %1689 = vdwg.mxu0
    %s1690 = scalar_lea.vmem %s5, 4
    %v1691 = vld [vmem:[%s1690] sm:$0x3]
    %v1693 = vlaneseq
    %v1694 = vshrl.u32 %v1693, 7
    %v1695 = vsub.s32 0, %v1694
    %v1696 = vrot.slane %v1691, %v1695
    %v1697 = vlaneseq
    %v1698 = vshrl.u32 %v1697, 7
    %v1699 = vsub.s32 1, %v1698
    %v1700 = vrot.slane %v1691, %v1699
    %v1703 = vmul.f32 %v1652, %v1696
    %v1704 = vmul.f32 %v1654, %v1700
    %v1705 = vmul.f32 %v1656, %v1696
    %v1706 = vmul.f32 %v1658, %v1700
    %v1707 = vmul.f32 %v1662, %v1696
    %v1708 = vmul.f32 %v1664, %v1700
    %v1709 = vmul.f32 %v1666, %v1696
    %v1710 = vmul.f32 %v1668, %v1700
    %v1711 = vmul.f32 %v1672, %v1696
    %v1712 = vmul.f32 %v1674, %v1700
    %v1713 = vmul.f32 %v1676, %v1696
    %v1714 = vmul.f32 %v1678, %v1700
    %v1715 = vmul.f32 %v1682, %v1696
    %v1716 = vmul.f32 %v1684, %v1700
    %v1717 = vmul.f32 %v1686, %v1696
    %v1718 = vmul.f32 %v1688, %v1700
    %s1719 = scalar_lea.vmem [#allocation7], 4
    %v1720 = vld [vmem:[%s1719] sm:$0x3]
    %v1722 = vlaneseq
    %v1723 = vshrl.u32 %v1722, 7
    %v1724 = vsub.s32 0, %v1723
    %v1725 = vrot.slane %v1720, %v1724
    %v1726 = vlaneseq
    %v1727 = vshrl.u32 %v1726, 7
    %v1728 = vsub.s32 1, %v1727
    %v1729 = vrot.slane %v1720, %v1728
    %v1732 = vadd.f32 %v1703, %v1725
    %v1733 = vadd.f32 %v1704, %v1729
    %v1734 = vadd.f32 %v1705, %v1725
    %v1735 = vadd.f32 %v1706, %v1729
    %v1736 = vadd.f32 %v1707, %v1725
    %v1737 = vadd.f32 %v1708, %v1729
    %v1738 = vadd.f32 %v1709, %v1725
    %v1739 = vadd.f32 %v1710, %v1729
    %v1740 = vadd.f32 %v1711, %v1725
    %v1741 = vadd.f32 %v1712, %v1729
    %v1742 = vadd.f32 %v1713, %v1725
    %v1743 = vadd.f32 %v1714, %v1729
    %v1744 = vadd.f32 %v1715, %v1725
    %v1745 = vadd.f32 %v1716, %v1729
    %v1746 = vadd.f32 %v1717, %v1725
    %v1747 = vadd.f32 %v1718, %v1729
    %v1748 = vmax.f32 %v1732, 0.0
    %v1749 = vmax.f32 %v1733, 0.0
    %v1750 = vmax.f32 %v1734, 0.0
    %v1751 = vmax.f32 %v1735, 0.0
    %v1752 = vmax.f32 %v1736, 0.0
    %v1753 = vmax.f32 %v1737, 0.0
    %v1754 = vmax.f32 %v1738, 0.0
    %v1755 = vmax.f32 %v1739, 0.0
    %v1756 = vmax.f32 %v1740, 0.0
    %v1757 = vmax.f32 %v1741, 0.0
    %v1758 = vmax.f32 %v1742, 0.0
    %v1759 = vmax.f32 %v1743, 0.0
    %v1760 = vmax.f32 %v1744, 0.0
    %v1761 = vmax.f32 %v1745, 0.0
    %v1762 = vmax.f32 %v1746, 0.0
    %v1763 = vmax.f32 %v1747, 0.0
    %v1764 = vpack.c.bf16 %v1750, %v1748
    %v1765 = vpack.c.bf16 %v1751, %v1749
    %v1766 = vpack.c.bf16 %v1754, %v1752
    %v1767 = vpack.c.bf16 %v1755, %v1753
    %v1768 = vpack.c.bf16 %v1758, %v1756
    %v1769 = vpack.c.bf16 %v1759, %v1757
    %v1770 = vpack.c.bf16 %v1762, %v1760
    %v1771 = vpack.c.bf16 %v1763, %v1761
    %s1772 = scalar_lea.vmem [#allocation8], 256
    %v1773 = vld [vmem:[%s1772] sm:$0xf]
    %v1774 = vld [vmem:[%s1772 + $0x4] sm:$0xf]
    %v1775 = vld [vmem:[%s1772 + $0x8] sm:$0xf]
    %v1776 = vld [vmem:[%s1772 + $0xc] sm:$0xf]
    %v1777 = vld [vmem:[%s1772 + $0x10] sm:$0xf]
    %v1778 = vld [vmem:[%s1772 + $0x14] sm:$0xf]
    %v1779 = vld [vmem:[%s1772 + $0x18] sm:$0xf]
    %v1780 = vld [vmem:[%s1772 + $0x1c] sm:$0xf]
    %v1781 = vld [vmem:[%s1772 + $0x20] sm:$0xf]
    %v1782 = vld [vmem:[%s1772 + $0x24] sm:$0xf]
    %v1783 = vld [vmem:[%s1772 + $0x28] sm:$0xf]
    %v1784 = vld [vmem:[%s1772 + $0x2c] sm:$0xf]
    %v1785 = vld [vmem:[%s1772 + $0x30] sm:$0xf]
    %v1786 = vld [vmem:[%s1772 + $0x34] sm:$0xf]
    %v1787 = vld [vmem:[%s1772 + $0x38] sm:$0xf]
    %v1788 = vld [vmem:[%s1772 + $0x3c] sm:$0xf]
    %v1789 = vld [vmem:[%s1772 + $0x40] sm:$0xf]
    %v1790 = vld [vmem:[%s1772 + $0x44] sm:$0xf]
    %v1791 = vld [vmem:[%s1772 + $0x48] sm:$0xf]
    %v1792 = vld [vmem:[%s1772 + $0x4c] sm:$0xf]
    %v1793 = vld [vmem:[%s1772 + $0x50] sm:$0xf]
    %v1794 = vld [vmem:[%s1772 + $0x54] sm:$0xf]
    %v1795 = vld [vmem:[%s1772 + $0x58] sm:$0xf]
    %v1796 = vld [vmem:[%s1772 + $0x5c] sm:$0xf]
    %v1797 = vld [vmem:[%s1772 + $0x60] sm:$0xf]
    %v1798 = vld [vmem:[%s1772 + $0x64] sm:$0xf]
    %v1799 = vld [vmem:[%s1772 + $0x68] sm:$0xf]
    %v1800 = vld [vmem:[%s1772 + $0x6c] sm:$0xf]
    %v1801 = vld [vmem:[%s1772 + $0x70] sm:$0xf]
    %v1802 = vld [vmem:[%s1772 + $0x74] sm:$0xf]
    %v1803 = vld [vmem:[%s1772 + $0x78] sm:$0xf]
    %v1804 = vld [vmem:[%s1772 + $0x7c] sm:$0xf]
    %v1837 = vunpack.c.l.b16 %v1773
    %v1838 = vunpack.c.l.b16 %v1774
    %v1839 = vunpack.c.l.b16 %v1775
    %v1840 = vunpack.c.l.b16 %v1776
    %v1841 = vunpack.c.l.b16 %v1777
    %v1842 = vunpack.c.l.b16 %v1778
    %v1843 = vunpack.c.l.b16 %v1779
    %v1844 = vunpack.c.l.b16 %v1780
    %v1845 = vunpack.c.l.b16 %v1781
    %v1846 = vunpack.c.l.b16 %v1782
    %v1847 = vunpack.c.l.b16 %v1783
    %v1848 = vunpack.c.l.b16 %v1784
    %v1849 = vunpack.c.l.b16 %v1785
    %v1850 = vunpack.c.l.b16 %v1786
    %v1851 = vunpack.c.l.b16 %v1787
    %v1852 = vunpack.c.l.b16 %v1788
    %v1853 = vunpack.c.l.b16 %v1789
    %v1854 = vunpack.c.l.b16 %v1790
    %v1855 = vunpack.c.l.b16 %v1791
    %v1856 = vunpack.c.l.b16 %v1792
    %v1857 = vunpack.c.l.b16 %v1793
    %v1858 = vunpack.c.l.b16 %v1794
    %v1859 = vunpack.c.l.b16 %v1795
    %v1860 = vunpack.c.l.b16 %v1796
    %v1861 = vunpack.c.l.b16 %v1797
    %v1862 = vunpack.c.l.b16 %v1798
    %v1863 = vunpack.c.l.b16 %v1799
    %v1864 = vunpack.c.l.b16 %v1800
    %v1865 = vunpack.c.l.b16 %v1801
    %v1866 = vunpack.c.l.b16 %v1802
    %v1867 = vunpack.c.l.b16 %v1803
    %v1868 = vunpack.c.l.b16 %v1804
    %v1869 = vpack.c.b16 %v1838, %v1837
    %v1870 = vpack.c.b16 %v1840, %v1839
    %v1871 = vpack.c.b16 %v1842, %v1841
    %v1872 = vpack.c.b16 %v1844, %v1843
    %v1873 = vpack.c.b16 %v1846, %v1845
    %v1874 = vpack.c.b16 %v1848, %v1847
    %v1875 = vpack.c.b16 %v1850, %v1849
    %v1876 = vpack.c.b16 %v1852, %v1851
    %v1877 = vpack.c.b16 %v1854, %v1853
    %v1878 = vpack.c.b16 %v1856, %v1855
    %v1879 = vpack.c.b16 %v1858, %v1857
    %v1880 = vpack.c.b16 %v1860, %v1859
    %v1881 = vpack.c.b16 %v1862, %v1861
    %v1882 = vpack.c.b16 %v1864, %v1863
    %v1883 = vpack.c.b16 %v1866, %v1865
    %v1884 = vpack.c.b16 %v1868, %v1867
    %1901 = vmatprep.subr.bf16.mxu0 0
    %1902 = vmatpush1.bf16.msra.mxu0 %v1876
    %1903 = vmatprep.subr.bf16.mxu0 0
    %1904 = vmatpush1.bf16.msra.mxu0 %v1875
    %1905 = vmatprep.subr.bf16.mxu0 0
    %1906 = vmatpush1.bf16.msra.mxu0 %v1874
    %1907 = vmatprep.subr.bf16.mxu0 0
    %1908 = vmatpush1.bf16.msra.mxu0 %v1873
    %1909 = vmatprep.subr.bf16.mxu0 0
    %1910 = vmatpush1.bf16.msra.mxu0 %v1872
    %1911 = vmatprep.subr.bf16.mxu0 0
    %1912 = vmatpush1.bf16.msra.mxu0 %v1871
    %1913 = vmatprep.subr.bf16.mxu0 0
    %1914 = vmatpush1.bf16.msra.mxu0 %v1870
    %1915 = vmatprep.subr.bf16.mxu0 0
    %1916 = vmatpush1.bf16.msra.mxu0 %v1869
    %1917 = vmatprep.subr.bf16.mxu0 0
    %1918 = vmatpush2.bf16.msra.mxu0 %v1884
    %1919 = vmatprep.subr.bf16.mxu0 0
    %1920 = vmatpush2.bf16.msra.mxu0 %v1883
    %1921 = vmatprep.subr.bf16.mxu0 0
    %1922 = vmatpush2.bf16.msra.mxu0 %v1882
    %1923 = vmatprep.subr.bf16.mxu0 0
    %1924 = vmatpush2.bf16.msra.mxu0 %v1881
    %1925 = vmatprep.subr.bf16.mxu0 0
    %1926 = vmatpush2.bf16.msra.mxu0 %v1880
    %1927 = vmatprep.subr.bf16.mxu0 0
    %1928 = vmatpush2.bf16.msra.mxu0 %v1879
    %1929 = vmatprep.subr.bf16.mxu0 0
    %1930 = vmatpush2.bf16.msra.mxu0 %v1878
    %1931 = vmatprep.subr.bf16.mxu0 0
    %1932 = vmatpush2.bf16.msra.mxu0 %v1877
    %1933 = vmatprep.mubr.bf16.mxu0 %v1765
    %1934 = vmatmul.mubr.bf16.gmra.mxu0 %v1764
    %v1935 = vpop.f32.mrf.mxu0
    %v1936 = vadd.f32 0.0, %v1935
    %v1937 = vpop.f32.mrf.mxu0
    %v1938 = vpop.f32.mrf.mxu0
    %v1939 = vadd.f32 0.0, %v1938
    %v1940 = vpop.f32.mrf.mxu0
    %1941 = vmatprep.mubr.bf16.mxu0 %v1767
    %1942 = vmatmul.mubr.bf16.gmra.mxu0 %v1766
    %v1943 = vpop.f32.mrf.mxu0
    %v1944 = vadd.f32 0.0, %v1943
    %v1945 = vpop.f32.mrf.mxu0
    %v1946 = vpop.f32.mrf.mxu0
    %v1947 = vadd.f32 0.0, %v1946
    %v1948 = vpop.f32.mrf.mxu0
    %1949 = vmatprep.mubr.bf16.mxu0 %v1769
    %1950 = vmatmul.mubr.bf16.gmra.mxu0 %v1768
    %v1951 = vpop.f32.mrf.mxu0
    %v1952 = vadd.f32 0.0, %v1951
    %v1953 = vpop.f32.mrf.mxu0
    %v1954 = vpop.f32.mrf.mxu0
    %v1955 = vadd.f32 0.0, %v1954
    %v1956 = vpop.f32.mrf.mxu0
    %1957 = vmatprep.mubr.bf16.mxu0 %v1771
    %1958 = vmatmul.mubr.bf16.gmra.mxu0 %v1770
    %v1959 = vpop.f32.mrf.mxu0
    %v1960 = vadd.f32 0.0, %v1959
    %v1961 = vpop.f32.mrf.mxu0
    %v1962 = vpop.f32.mrf.mxu0
    %v1963 = vadd.f32 0.0, %v1962
    %v1964 = vpop.f32.mrf.mxu0
    %1965 = vdwg.mxu0
    %s1966 = scalar_lea.vmem %s8, 2
    %v1967 = vld [vmem:[%s1966] sm:$0x1]
    %v1969 = vlaneseq
    %v1970 = vshrl.u32 %v1969, 7
    %v1971 = vsub.s32 0, %v1970
    %v1972 = vrot.slane %v1967, %v1971
    %v1974 = vmul.f32 %v1936, %v1972
    %v1975 = vmul.f32 %v1939, %v1972
    %v1976 = vmul.f32 %v1944, %v1972
    %v1977 = vmul.f32 %v1947, %v1972
    %v1978 = vmul.f32 %v1952, %v1972
    %v1979 = vmul.f32 %v1955, %v1972
    %v1980 = vmul.f32 %v1960, %v1972
    %v1981 = vmul.f32 %v1963, %v1972
    %s1982 = scalar_lea.vmem %s9, 2
    %v1983 = vld [vmem:[%s1982] sm:$0x1]
    %v1985 = vlaneseq
    %v1986 = vshrl.u32 %v1985, 7
    %v1987 = vsub.s32 0, %v1986
    %v1988 = vrot.slane %v1983, %v1987
    %v1990 = vadd.f32 %v1974, %v1988
    %v1991 = vadd.f32 %v1975, %v1988
    %v1992 = vadd.f32 %v1976, %v1988
    %v1993 = vadd.f32 %v1977, %v1988
    %v1994 = vadd.f32 %v1978, %v1988
    %v1995 = vadd.f32 %v1979, %v1988
    %v1996 = vadd.f32 %v1980, %v1988
    %v1997 = vadd.f32 %v1981, %v1988
    %v1998 = vld [vmem:[%s10] sm:$0xf]
    %v2000 = vsel %vm286, %v1998, 0
    %2002 = vmatprep.subr.mxu0 0.0
    %2003 = vmatpush1.msra.mxu0 0.0
    %2004 = vmatprep.subr.mxu0 0.0
    %2005 = vmatpush1.msra.mxu0 0.0
    %2006 = vmatprep.subr.mxu0 0.0
    %2007 = vmatpush1.msra.mxu0 0.0
    %2008 = vmatprep.subr.mxu0 0.0
    %2009 = vmatpush1.msra.mxu0 0.0
    %2010 = vmatprep.subr.mxu0 0.0
    %2011 = vmatpush1.msra.mxu0 0.0
    %2012 = vmatprep.subr.mxu0 0.0
    %2013 = vmatpush1.msra.mxu0 0.0
    %2014 = vmatprep.subr.mxu0 0.0
    %2015 = vmatpush1.msra.mxu0 0.0
    %2016 = vmatprep.subr.mxu0 0.0
    %2017 = vmatpush1.msra.mxu0 0.0
    %2018 = vmatprep.subr.mxu0 0.0
    %2019 = vmatpush1.msra.mxu0 %v1997
    %2020 = vmatprep.subr.mxu0 0.0
    %2021 = vmatpush1.msra.mxu0 %v1996
    %2022 = vmatprep.subr.mxu0 0.0
    %2023 = vmatpush1.msra.mxu0 %v1995
    %2024 = vmatprep.subr.mxu0 0.0
    %2025 = vmatpush1.msra.mxu0 %v1994
    %2026 = vmatprep.subr.mxu0 0.0
    %2027 = vmatpush1.msra.mxu0 %v1993
    %2028 = vmatprep.subr.mxu0 0.0
    %2029 = vmatpush1.msra.mxu0 %v1992
    %2030 = vmatprep.subr.mxu0 0.0
    %2031 = vmatpush1.msra.mxu0 %v1991
    %2032 = vmatprep.subr.mxu0 0.0
    %2033 = vmatpush1.msra.mxu0 %v1990
    %2034 = vmatprep.subr.mxu0 0.0
    %2035 = vmatpush2.msra.mxu0 0.0
    %2036 = vmatprep.subr.mxu0 0.0
    %2037 = vmatpush2.msra.mxu0 0.0
    %2038 = vmatprep.subr.mxu0 0.0
    %2039 = vmatpush2.msra.mxu0 0.0
    %2040 = vmatprep.subr.mxu0 0.0
    %2041 = vmatpush2.msra.mxu0 0.0
    %2042 = vmatprep.subr.mxu0 0.0
    %2043 = vmatpush2.msra.mxu0 0.0
    %2044 = vmatprep.subr.mxu0 0.0
    %2045 = vmatpush2.msra.mxu0 0.0
    %2046 = vmatprep.subr.mxu0 0.0
    %2047 = vmatpush2.msra.mxu0 0.0
    %2048 = vmatprep.subr.mxu0 0.0
    %2049 = vmatpush2.msra.mxu0 0.0
    %2050 = vmatprep.subr.mxu0 0.0
    %2051 = vmatpush2.msra.mxu0 0.0
    %2052 = vmatprep.subr.mxu0 0.0
    %2053 = vmatpush2.msra.mxu0 0.0
    %2054 = vmatprep.subr.mxu0 0.0
    %2055 = vmatpush2.msra.mxu0 0.0
    %2056 = vmatprep.subr.mxu0 0.0
    %2057 = vmatpush2.msra.mxu0 0.0
    %2058 = vmatprep.subr.mxu0 0.0
    %2059 = vmatpush2.msra.mxu0 0.0
    %2060 = vmatprep.subr.mxu0 0.0
    %2061 = vmatpush2.msra.mxu0 0.0
    %2062 = vmatprep.subr.mxu0 0.0
    %2063 = vmatpush2.msra.mxu0 0.0
    %2064 = vmatprep.subr.mxu0 0.0
    %2065 = vmatpush2.msra.mxu0 0.0
    %2066 = vmatprep.mubr.f32.mxu0 0.0
    %2067 = vmatmul.mubr.f32.gmra.mxu0 %v2000
    %v2068 = vpop.f32.mrf.mxu0
    %v2069 = vadd.f32 0.0, %v2068
    %v2070 = vpop.f32.mrf.mxu0
    %2071 = vdwg.mxu0
    %2072 = vst [vmem:[#allocation11] sm:$0xf] %v2069
    // Predicated region
    $region70: #{tpu_custom_call.1} parent=1 // pred_check
      _
    $region71: #{tpu_custom_call.1} parent=1 // pred_check_branch
      %2074 = sbr.rel (0) target = $region73
    $region72: #{tpu_custom_call.1} parent=1 // pred_region
      %s2076 = ssub.s32 64, 64
      %2077 = vsyncadd [#allocation4], %s2076
      %s2079 = sshll.u32 [#allocation11], 4
      %s2080 = int_to_ptr.vmem [resolvable:$true] %s2079
      %2082 = dma.vmem_to_hbm [thread:$0]  %s2080, 64, %s12, [#allocation4]
    $region73: #{tpu_custom_call.1} parent=1 // pred_fallthru
      _
    // Predicated region
    $region74: #{tpu_custom_call.1} parent=1 // pred_check
      _
    $region75: #{tpu_custom_call.1} parent=1 // pred_check_branch
      %2084 = sbr.rel (0) target = $region77
    $region76: #{tpu_custom_call.1} parent=1 // pred_region
      %2085 = dma.done [#allocation4], 64
    $region77: #{tpu_custom_call.1} parent=1 // pred_fallthru
      _
    %2086 = vsyncpa [#allocation3], 1
    %2087 = vsyncpa [#allocation6], 1
    %2088 = vsyncpa [#allocation9], 1
    %2089 = vsyncpa [#allocation4], 1

</llo_original>
